<compile_context>
chip_gen: v5e
topology: v5e:2x2
jax: 0.10.0
libtpu: 0.0.40
codegen_flags: <defaults>
</compile_context>

<pallas_src>
import math
import functools

import numpy as np

import jax
import jax.numpy as jnp
from jax import lax
from jax.experimental import pallas as pl
from jax.experimental.pallas import tpu as pltpu


_MIB = 1024 * 1024


def _compiler_params(dims, vmem_need_bytes):
    """CompilerParams with an explicit, shape-derived VMEM limit."""
    try:
        cap = int(getattr(pltpu.get_tpu_info(), "vmem_capacity_bytes"))
    except Exception:
        cap = 64 * _MIB
    limit = int(min(max(int(vmem_need_bytes), 32 * _MIB), cap * 3 // 4))
    return pltpu.CompilerParams(dimension_semantics=dims, vmem_limit_bytes=limit)


# ----------------------------- fused Q/K/V/P projection ----------------------------- #
def _qkvp_proj_kernel(*refs, share_qkv):
    if share_qkv:
        (x_ref, xp_ref,
         wq_ref, wk_ref, wv_ref, wp_ref,
         bq_ref, bk_ref, bv_ref,
         oq_ref, ok_ref, ov_ref, op_ref) = refs
        xq16 = xk16 = xv16 = x_ref[...].astype(jnp.bfloat16)
    else:
        (xq_ref, xk_ref, xv_ref, xp_ref,
         wq_ref, wk_ref, wv_ref, wp_ref,
         bq_ref, bk_ref, bv_ref,
         oq_ref, ok_ref, ov_ref, op_ref) = refs
        xq16 = xq_ref[...].astype(jnp.bfloat16)
        xk16 = xk_ref[...].astype(jnp.bfloat16)
        xv16 = xv_ref[...].astype(jnp.bfloat16)
    xp16 = xp_ref[...].astype(jnp.bfloat16)

    def proj(x16, w_ref, b_ref, o_ref):
        acc = jnp.dot(x16, w_ref[...], preferred_element_type=jnp.float32)
        if b_ref is not None:
            acc = acc + b_ref[...]          # f32 bias add on the f32 accumulator
        o_ref[...] = acc.astype(o_ref.dtype)

    proj(xq16, wq_ref, bq_ref, oq_ref)
    proj(xk16, wk_ref, bk_ref, ok_ref)
    proj(xv16, wv_ref, bv_ref, ov_ref)
    proj(xp16, wp_ref, None, op_ref)        # pos_proj has no bias


def qkvp_proj_pallas(xq, xk, xv, xp, wq16, wk16, wv16, wp16, bq, bk, bv, tm=512):
    """Four (M, D) @ (D, D) projections in one tiled pallas_call (bf16 outputs).

    If xq/xk/xv are the same array object (self-attention), the activation is
    passed (and DMA'd) only once.
    """
    M, D = xq.shape
    tm = min(tm, M)
    share = (xq is xk) and (xk is xv)

    x_spec = pl.BlockSpec((tm, D), lambda m: (m, 0))
    w_spec = pl.BlockSpec((D, D), lambda m: (0, 0))
    b_spec = pl.BlockSpec((1, D), lambda m: (0, 0))
    o_spec = pl.BlockSpec((tm, D), lambda m: (m, 0))
    out_sds = jax.ShapeDtypeStruct((M, D), jnp.bfloat16)

    acts = (xq, xp) if share else (xq, xk, xv, xp)
    vmem_need = (2 * (len(acts) * tm * D * 4 + 4 * tm * D * 2)   # dbl-buffered acts/outs
                 + 4 * D * D * 2 + 6 * D * 4 + 2 * _MIB)         # weights, biases, slack
    kernel = functools.partial(_qkvp_proj_kernel, share_qkv=share)
    return pl.pallas_call(
        kernel,
        out_shape=(out_sds, out_sds, out_sds, out_sds),
        grid=(pl.cdiv(M, tm),),
        in_specs=[x_spec] * len(acts) + [w_spec] * 4 + [b_spec] * 3,
        out_specs=(o_spec, o_spec, o_spec, o_spec),
        compiler_params=_compiler_params(("parallel",), vmem_need),
    )(*acts, wq16, wk16, wv16, wp16,
      bq.reshape(1, D), bk.reshape(1, D), bv.reshape(1, D))


# ----------------------------- tiled linear (output projection) ----------------------------- #
def _linear_kernel(x_ref, w_ref, b_ref, o_ref):
    acc = jnp.dot(x_ref[...].astype(jnp.bfloat16), w_ref[...],
                  preferred_element_type=jnp.float32)
    o_ref[...] = (acc + b_ref[...]).astype(o_ref.dtype)


def linear_pallas(x, w16, b, tm=512, out_dtype=jnp.float32):
    """y = x @ w + b, tiled over rows (M); bf16 MXU operands, f32 accumulation."""
    M, Din = x.shape
    Dout = w16.shape[1]
    tm = min(tm, M)
    vmem_need = 2 * (tm * Din * 2 + tm * Dout * 4) + Din * Dout * 2 + 2 * _MIB
    return pl.pallas_call(
        _linear_kernel,
        out_shape=jax.ShapeDtypeStruct((M, Dout), out_dtype),
        grid=(pl.cdiv(M, tm),),
        in_specs=[pl.BlockSpec((tm, Din), lambda m: (m, 0)),
                  pl.BlockSpec((Din, Dout), lambda m: (0, 0)),
                  pl.BlockSpec((1, Dout), lambda m: (0, 0))],
        out_specs=pl.BlockSpec((tm, Dout), lambda m: (m, 0)),
        compiler_params=_compiler_params(("parallel",), vmem_need),
    )(x, w16, b.reshape(1, Dout))


# ----------------------------- fused attention kernel ----------------------------- #
def _roll_right_lanes(x, s, size):
    """np.roll(x, s, axis=-1) for static 0 < s < size."""
    if size % 128 == 0:
        return pltpu.roll(x, s, axis=x.ndim - 1)       # native XLU lane rotate
    # Small / unaligned key axis: slice-concat fallback (relayout copy).
    return jnp.concatenate([x[:, size - s:], x[:, :size - s]], axis=1)


def _attention_kernel(q_ref, k_ref, v_ref, p_ref, ub_ref, vb_ref, mask_ref, o_ref,
                      *, H, dh, T, tq):
    qi = pl.program_id(1)
    q0 = pl.multiple_of(qi * tq, tq)

    k16 = k_ref[...]                        # (T, D) bf16, heads folded into lanes
    v16 = v_ref[...]
    p16 = p_ref[...]
    ub = ub_ref[...]                        # (1, D) bf16, already * 1/sqrt(dim)
    vb = vb_ref[...]

    # Query tile plus one extra (clamped) row: the relative shift of global row a
    # reads the pos score of row a+1, so the last row of a tile needs row q0+tq.
    qt = q_ref[pl.ds(q0, tq), :]            # (tq, D) bf16, already * 1/sqrt(dim)
    nxt = jnp.minimum(q0 + tq, T - 1)
    qn = q_ref[pl.ds(nxt, 1), :]            # (1, D)

    qu16 = qt + ub                                         # (tq, D)
    qv16 = jnp.concatenate([qt + vb, qn + vb], axis=0)     # (tq + 1, D)

    masked = mask_ref[...] != 0             # (1, T) or (tq, T), broadcasts over rows

    # --- constants for the relative shift, hoisted out of the head loop ---
    row = lax.broadcasted_iota(jnp.int32, (tq, T), 0) + q0     # global query row a
    col = lax.broadcasted_iota(jnp.int32, (tq, T), 1)
    lower = col <= row                       # take Q[a]
    upper = col >= row + 2                   # take Q[a + 1]
    amt = lax.broadcasted_iota(jnp.int32, (tq + 1, 1), 0) + q0 + 1   # per-row roll a+1
    nbits = (T - 1).bit_length()
    bit_set = [(jnp.right_shift(amt, t) & 1) == 1 for t in range(nbits)]

    contract_last = (((1,), (1,)), ((), ()))
    ctx_parts = []
    for h in range(H):                       # static loop; heads are static lane slices
        sl = slice(h * dh, (h + 1) * dh)
        content = lax.dot_general(qu16[:, sl], k16[:, sl], contract_last,
                                  preferred_element_type=jnp.float32)    # (tq, T)
        pos_ext = lax.dot_general(qv16[:, sl], p16[:, sl], contract_last,
                                  preferred_element_type=jnp.float32)    # (tq+1, T)

        # Transformer-XL relative shift: Q[a, c] = pos[a, (c - a - 1) mod T]
        # (row a rolled right by a+1), built from log2(T) static lane rolls.
        qmat = pos_ext
        for t in range(nbits):
            qmat = jnp.where(bit_set[t], _roll_right_lanes(qmat, 1 << t, T), qmat)
        q_cur = qmat[:tq]                    # Q[a]   for a in [q0, q0+tq)
        q_up = qmat[1:]                      # Q[a+1] (the clamped extra row is never
                                             #         selected on the last tile)
        shifted = jnp.where(lower, q_cur, jnp.where(upper, q_up, 0.0))

        score = content + shifted            # already scaled by 1/sqrt(dim)
        score = jnp.where(masked, -10000.0, score)

        # softmax over keys (dropout is identity in this deterministic forward)
        mx = jnp.max(score, axis=-1, keepdims=True)
        ex = jnp.exp(score - mx)
        denom = jnp.sum(ex, axis=-1, keepdims=True)
        attn = ex * pl.reciprocal(denom, approx=True)

        ctx_h = jnp.dot(attn.astype(jnp.bfloat16), v16[:, sl],
                        preferred_element_type=jnp.float32)              # (tq, dh)
        if dh % 128 == 0:
            o_ref[:, sl] = ctx_h.astype(o_ref.dtype)     # full-lane per-head store
        else:
            ctx_parts.append(ctx_h)

    if dh % 128 != 0:
        # keep one lane-dense (tq, D) store when heads are narrower than a vreg
        o_ref[...] = jnp.concatenate(ctx_parts, axis=1).astype(o_ref.dtype)


def _pick_tq(T, max_tq=256):
    if T % 8 != 0 or T <= max_tq:
        return T
    best = T
    for cand in range(8, max_tq + 1, 8):
        if T % cand == 0:
            best = cand
    return best


def attention_pallas(q, k, v, p, ub16, vb16, mask_arr, num_heads, tq):
    """q/k/v/p: (B, T, D) bf16 with heads folded in the last dim.
    mask_arr: (B, 1, T) or (B, T, T) int32 (nonzero = masked)."""
    B, T, D = q.shape
    H = num_heads
    dh = D // H
    assert T % tq == 0, "tq must divide T"
    nq = T // tq

    btd_spec = pl.BlockSpec((None, T, D), lambda b, qi: (b, 0, 0))
    bias_spec = pl.BlockSpec((1, D), lambda b, qi: (0, 0))
    if mask_arr.shape[1] == 1:
        mask_spec = pl.BlockSpec((None, 1, T), lambda b, qi: (b, 0, 0))
        mask_rows = 1
    else:
        mask_spec = pl.BlockSpec((None, tq, T), lambda b, qi: (b, qi, 0))
        mask_rows = tq
    out_spec = pl.BlockSpec((None, tq, D), lambda b, qi: (b, qi, 0))

    kernel = functools.partial(_attention_kernel, H=H, dh=dh, T=T, tq=tq)
    vmem_need = (2 * (4 * T * D * 2 + tq * D * 2 + mask_rows * T * 4)
                 + 12 * tq * T * 4 + 2 * _MIB)
    return pl.pallas_call(
        kernel,
        out_shape=jax.ShapeDtypeStruct((B, T, D), jnp.bfloat16),
        grid=(B, nq),
        in_specs=[btd_spec, btd_spec, btd_spec, btd_spec,
                  bias_spec, bias_spec, mask_spec],
        out_specs=out_spec,
        compiler_params=_compiler_params(("parallel", "parallel"), vmem_need),
    )(q, k, v, p, ub16, vb16, mask_arr)


# ----------------------------- module forward (Pallas) ----------------------------- #
def relative_mha_pallas(params, query, key, value, pos_embedding, mask=None, tq=None):
    B, T, D = query.shape
    H, dh = params["u_bias"].shape
    M = B * T
    inv = 1.0 / math.sqrt(D)

    # Host-side prep (one-time in real usage): fold 1/sqrt(dim) into the query
    # path and store MXU weights in bf16; biases added in f32 stay f32.
    wq16 = (params["Wq"] * inv).astype(jnp.bfloat16)
    wk16 = params["Wk"].astype(jnp.bfloat16)
    wv16 = params["Wv"].astype(jnp.bfloat16)
    wp16 = params["Wp"].astype(jnp.bfloat16)
    wo16 = params["Wo"].astype(jnp.bfloat16)
    bq = params["bq"] * inv
    ub16 = (params["u_bias"].reshape(1, D) * inv).astype(jnp.bfloat16)
    vb16 = (params["v_bias"].reshape(1, D) * inv).astype(jnp.bfloat16)

    # Dedupe identical activations (self-attention: query is key is value).
    share = (query is key) and (key is value)
    xq = query.reshape(M, D)
    xk = xq if share else key.reshape(M, D)
    xv = xq if share else value.reshape(M, D)
    xp = pos_embedding.reshape(M, D)

    q2, k2, v2, p2 = qkvp_proj_pallas(xq, xk, xv, xp,
                                      wq16, wk16, wv16, wp16,
                                      bq, params["bk"], params["bv"])

    q = q2.reshape(B, T, D)
    k = k2.reshape(B, T, D)
    v = v2.reshape(B, T, D)
    p = p2.reshape(B, T, D)

    if mask is None:
        mask_arr = jnp.zeros((B, 1, T), jnp.int32)      # tiny; no (B,T,T) allocation
    else:
        mask_arr = mask.astype(jnp.int32)
        if mask_arr.ndim == 2:
            mask_arr = mask_arr[:, None, :]

    if tq is None:
        tq = _pick_tq(T)

    ctx = attention_pallas(q, k, v, p, ub16, vb16, mask_arr, H, tq)   # (B,T,D) bf16
    out = linear_pallas(ctx.reshape(M, D), wo16, params["bo"])
    return out.reshape(B, T, D)


# ----------------------------- pure-JAX reference (mirrors torch ops) --------------- #
def relative_mha_reference(params, query, key, value, pos_embedding, mask=None):
    B, T, D = query.shape
    H, dh = params["u_bias"].shape

    def lin(x, w, b=None):
        y = x.reshape(B * T, D) @ w
        if b is not None:
            y = y + b
        return y.reshape(B, T, H, dh)

    q = lin(query, params["Wq"], params["bq"])
    k = lin(key, params["Wk"], params["bk"]).transpose(0, 2, 1, 3)
    v = lin(value, params["Wv"], params["bv"]).transpose(0, 2, 1, 3)
    p = lin(pos_embedding, params["Wp"])

    content = jnp.matmul((q + params["u_bias"]).transpose(0, 2, 1, 3),
                         k.transpose(0, 1, 3, 2))
    pos_score = jnp.matmul((q + params["v_bias"]).transpose(0, 2, 1, 3),
                           p.transpose(0, 2, 3, 1))
    # exact torch _relative_shift op sequence
    zeros = jnp.zeros((B, H, T, 1), pos_score.dtype)
    padded = jnp.concatenate([zeros, pos_score], axis=-1)
    padded = padded.reshape(B, H, T + 1, T)
    pos_score = padded[:, :, 1:].reshape(B, H, T, T)

    score = (content + pos_score) / math.sqrt(D)
    if mask is not None:
        score = jnp.where(mask[:, None], -10000.0, score)
    attn = jax.nn.softmax(score, axis=-1)
    ctx = jnp.matmul(attn, v).transpose(0, 2, 1, 3).reshape(B, T, D)
    return ctx @ params["Wo"] + params["bo"]


# ----------------------------- deterministic parameter init ----------------------------- #
def init_params(key, dim, num_heads):
    dh = dim // num_heads
    ks = jax.random.split(key, 10)
    s = 1.0 / math.sqrt(dim)
    xav = math.sqrt(6.0 / (num_heads + dh))
    return {
        "Wq": jax.random.normal(ks[0], (dim, dim), jnp.float32) * s,
        "bq": jax.random.normal(ks[1], (dim,), jnp.float32) * 0.01,
        "Wk": jax.random.normal(ks[2], (dim, dim), jnp.float32) * s,
        "bk": jax.random.normal(ks[3], (dim,), jnp.float32) * 0.01,
        "Wv": jax.random.normal(ks[4], (dim, dim), jnp.float32) * s,
        "bv": jax.random.normal(ks[5], (dim,), jnp.float32) * 0.01,
        "Wp": jax.random.normal(ks[6], (dim, dim), jnp.float32) * s,   # pos_proj, no bias
        "Wo": jax.random.normal(ks[7], (dim, dim), jnp.float32) * s,
        "bo": jnp.zeros((dim,), jnp.float32),
        "u_bias": jax.random.uniform(ks[8], (num_heads, dh), jnp.float32, -xav, xav),
        "v_bias": jax.random.uniform(ks[9], (num_heads, dh), jnp.float32, -xav, xav),
    }


if __name__ == "__main__":
    # Small but representative: T is 128-lane aligned so the native pltpu.roll
    # path and the query-tile grid axis (tq=64 -> grid=(2, 2)) are exercised.
    B, T, dim, num_heads = 2, 128, 64, 4

    root = jax.random.PRNGKey(0)
    kq, kk, kv, kp, kparam = jax.random.split(root, 5)
    query = jax.random.normal(kq, (B, T, dim), jnp.float32)
    key_in = jax.random.normal(kk, (B, T, dim), jnp.float32)
    value = jax.random.normal(kv, (B, T, dim), jnp.float32)
    pos_emb = jax.random.normal(kp, (B, T, dim), jnp.float32)

    lengths = jnp.array([T, 90])
    mask = jnp.arange(T)[None, None, :] >= lengths[:, None, None]   # (B, 1, T) bool

    params = init_params(kparam, dim, num_heads)

    # cross-attention-style inputs + (B,1,T) key mask
    out = relative_mha_pallas(params, query, key_in, value, pos_emb, mask, tq=64)
    out = jax.block_until_ready(out)
    ref = relative_mha_reference(params, query, key_in, value, pos_emb, mask)
    np.testing.assert_allclose(np.asarray(out), np.asarray(ref), rtol=3e-2, atol=3e-2)

    # self-attention path (query is key is value -> single activation DMA) + no mask
    out_sa = relative_mha_pallas(params, query, query, query, pos_emb, None, tq=64)
    out_sa = jax.block_until_ready(out_sa)
    ref_sa = relative_mha_reference(params, query, query, query, pos_emb, None)
    np.testing.assert_allclose(np.asarray(out_sa), np.asarray(ref_sa), rtol=3e-2, atol=3e-2)

    print("KERNEL_OK")
</pallas_src>

<mosaic_0001>
module attributes {stable_mosaic.version = 11 : i64} {
  func.func @_qkvp_proj_kernel(%arg0: i32, %arg1: memref<256x64xf32, #tpu.memory_space<vmem>>, %arg2: memref<256x64xf32, #tpu.memory_space<vmem>>, %arg3: memref<256x64xf32, #tpu.memory_space<vmem>>, %arg4: memref<256x64xf32, #tpu.memory_space<vmem>>, %arg5: memref<64x64xbf16, #tpu.memory_space<vmem>>, %arg6: memref<64x64xbf16, #tpu.memory_space<vmem>>, %arg7: memref<64x64xbf16, #tpu.memory_space<vmem>>, %arg8: memref<64x64xbf16, #tpu.memory_space<vmem>>, %arg9: memref<1x64xf32, #tpu.memory_space<vmem>>, %arg10: memref<1x64xf32, #tpu.memory_space<vmem>>, %arg11: memref<1x64xf32, #tpu.memory_space<vmem>>, %arg12: memref<256x64xbf16, #tpu.memory_space<vmem>>, %arg13: memref<256x64xbf16, #tpu.memory_space<vmem>>, %arg14: memref<256x64xbf16, #tpu.memory_space<vmem>>, %arg15: memref<256x64xbf16, #tpu.memory_space<vmem>>) attributes {dimension_semantics = [#tpu.dimension_semantics<parallel>], iteration_bounds = array<i64: 1>, scalar_prefetch = 0 : i64, scratch_operands = 0 : i64, tpu.core_type = #tpu.core_type<tc>, window_params = [{transform_indices = @transform_0, window_bounds = array<i64: 256, 64>}, {transform_indices = @transform_1, window_bounds = array<i64: 256, 64>}, {transform_indices = @transform_2, window_bounds = array<i64: 256, 64>}, {transform_indices = @transform_3, window_bounds = array<i64: 256, 64>}, {pipeline_mode = #tpu.pipeline_mode<synchronous>, transform_indices = @transform_4, window_bounds = array<i64: 64, 64>}, {pipeline_mode = #tpu.pipeline_mode<synchronous>, transform_indices = @transform_5, window_bounds = array<i64: 64, 64>}, {pipeline_mode = #tpu.pipeline_mode<synchronous>, transform_indices = @transform_6, window_bounds = array<i64: 64, 64>}, {pipeline_mode = #tpu.pipeline_mode<synchronous>, transform_indices = @transform_7, window_bounds = array<i64: 64, 64>}, {pipeline_mode = #tpu.pipeline_mode<synchronous>, transform_indices = @transform_8, window_bounds = array<i64: 1, 64>}, {pipeline_mode = #tpu.pipeline_mode<synchronous>, transform_indices = @transform_9, window_bounds = array<i64: 1, 64>}, {pipeline_mode = #tpu.pipeline_mode<synchronous>, transform_indices = @transform_10, window_bounds = array<i64: 1, 64>}, {transform_indices = @transform_11, window_bounds = array<i64: 256, 64>}, {transform_indices = @transform_12, window_bounds = array<i64: 256, 64>}, {transform_indices = @transform_13, window_bounds = array<i64: 256, 64>}, {transform_indices = @transform_14, window_bounds = array<i64: 256, 64>}]} {
    %c0 = arith.constant 0 : index
    %c0_0 = arith.constant 0 : index
    %0 = vector.load %arg1[%c0, %c0_0] : memref<256x64xf32, #tpu.memory_space<vmem>>, vector<256x64xf32>
    %1 = arith.truncf %0 : vector<256x64xf32> to vector<256x64xbf16>
    %c0_1 = arith.constant 0 : index
    %c0_2 = arith.constant 0 : index
    %2 = vector.load %arg2[%c0_1, %c0_2] : memref<256x64xf32, #tpu.memory_space<vmem>>, vector<256x64xf32>
    %3 = arith.truncf %2 : vector<256x64xf32> to vector<256x64xbf16>
    %c0_3 = arith.constant 0 : index
    %c0_4 = arith.constant 0 : index
    %4 = vector.load %arg3[%c0_3, %c0_4] : memref<256x64xf32, #tpu.memory_space<vmem>>, vector<256x64xf32>
    %5 = arith.truncf %4 : vector<256x64xf32> to vector<256x64xbf16>
    %c0_5 = arith.constant 0 : index
    %c0_6 = arith.constant 0 : index
    %6 = vector.load %arg4[%c0_5, %c0_6] : memref<256x64xf32, #tpu.memory_space<vmem>>, vector<256x64xf32>
    %7 = arith.truncf %6 : vector<256x64xf32> to vector<256x64xbf16>
    %c0_7 = arith.constant 0 : index
    %c0_8 = arith.constant 0 : index
    %8 = vector.load %arg5[%c0_7, %c0_8] : memref<64x64xbf16, #tpu.memory_space<vmem>>, vector<64x64xbf16>
    %cst = arith.constant dense<0.000000e+00> : vector<256x64xf32>
    %9 = tpu.matmul %1, %8, %cst {dimension_numbers = #tpu.dot_dimension_numbers<[1], [0], [0], [1], [0, 0, 1, 1], [], []>} : vector<256x64xbf16>, vector<64x64xbf16>, vector<256x64xf32> -> vector<256x64xf32>
    %c0_9 = arith.constant 0 : index
    %c0_10 = arith.constant 0 : index
    %10 = vector.load %arg9[%c0_9, %c0_10] : memref<1x64xf32, #tpu.memory_space<vmem>>, vector<1x64xf32>
    %11 = vector.broadcast %10 : vector<1x64xf32> to vector<256x64xf32>
    %12 = arith.addf %9, %11 : vector<256x64xf32>
    %13 = arith.truncf %12 : vector<256x64xf32> to vector<256x64xbf16>
    %c0_11 = arith.constant 0 : index
    %c0_12 = arith.constant 0 : index
    %14 = vector.load %arg12[%c0_11, %c0_12] : memref<256x64xbf16, #tpu.memory_space<vmem>>, vector<256x64xbf16>
    tpu.vector_store %arg12[%c0_11, %c0_12], %13 {strides = array<i32>} : memref<256x64xbf16, #tpu.memory_space<vmem>>, vector<256x64xbf16>,
    %c0_13 = arith.constant 0 : index
    %c0_14 = arith.constant 0 : index
    %15 = vector.load %arg6[%c0_13, %c0_14] : memref<64x64xbf16, #tpu.memory_space<vmem>>, vector<64x64xbf16>
    %cst_15 = arith.constant dense<0.000000e+00> : vector<256x64xf32>
    %16 = tpu.matmul %3, %15, %cst_15 {dimension_numbers = #tpu.dot_dimension_numbers<[1], [0], [0], [1], [0, 0, 1, 1], [], []>} : vector<256x64xbf16>, vector<64x64xbf16>, vector<256x64xf32> -> vector<256x64xf32>
    %c0_16 = arith.constant 0 : index
    %c0_17 = arith.constant 0 : index
    %17 = vector.load %arg10[%c0_16, %c0_17] : memref<1x64xf32, #tpu.memory_space<vmem>>, vector<1x64xf32>
    %18 = vector.broadcast %17 : vector<1x64xf32> to vector<256x64xf32>
    %19 = arith.addf %16, %18 : vector<256x64xf32>
    %20 = arith.truncf %19 : vector<256x64xf32> to vector<256x64xbf16>
    %c0_18 = arith.constant 0 : index
    %c0_19 = arith.constant 0 : index
    %21 = vector.load %arg13[%c0_18, %c0_19] : memref<256x64xbf16, #tpu.memory_space<vmem>>, vector<256x64xbf16>
    tpu.vector_store %arg13[%c0_18, %c0_19], %20 {strides = array<i32>} : memref<256x64xbf16, #tpu.memory_space<vmem>>, vector<256x64xbf16>,
    %c0_20 = arith.constant 0 : index
    %c0_21 = arith.constant 0 : index
    %22 = vector.load %arg7[%c0_20, %c0_21] : memref<64x64xbf16, #tpu.memory_space<vmem>>, vector<64x64xbf16>
    %cst_22 = arith.constant dense<0.000000e+00> : vector<256x64xf32>
    %23 = tpu.matmul %5, %22, %cst_22 {dimension_numbers = #tpu.dot_dimension_numbers<[1], [0], [0], [1], [0, 0, 1, 1], [], []>} : vector<256x64xbf16>, vector<64x64xbf16>, vector<256x64xf32> -> vector<256x64xf32>
    %c0_23 = arith.constant 0 : index
    %c0_24 = arith.constant 0 : index
    %24 = vector.load %arg11[%c0_23, %c0_24] : memref<1x64xf32, #tpu.memory_space<vmem>>, vector<1x64xf32>
    %25 = vector.broadcast %24 : vector<1x64xf32> to vector<256x64xf32>
    %26 = arith.addf %23, %25 : vector<256x64xf32>
    %27 = arith.truncf %26 : vector<256x64xf32> to vector<256x64xbf16>
    %c0_25 = arith.constant 0 : index
    %c0_26 = arith.constant 0 : index
    %28 = vector.load %arg14[%c0_25, %c0_26] : memref<256x64xbf16, #tpu.memory_space<vmem>>, vector<256x64xbf16>
    tpu.vector_store %arg14[%c0_25, %c0_26], %27 {strides = array<i32>} : memref<256x64xbf16, #tpu.memory_space<vmem>>, vector<256x64xbf16>,
    %c0_27 = arith.constant 0 : index
    %c0_28 = arith.constant 0 : index
    %29 = vector.load %arg8[%c0_27, %c0_28] : memref<64x64xbf16, #tpu.memory_space<vmem>>, vector<64x64xbf16>
    %cst_29 = arith.constant dense<0.000000e+00> : vector<256x64xf32>
    %30 = tpu.matmul %7, %29, %cst_29 {dimension_numbers = #tpu.dot_dimension_numbers<[1], [0], [0], [1], [0, 0, 1, 1], [], []>} : vector<256x64xbf16>, vector<64x64xbf16>, vector<256x64xf32> -> vector<256x64xf32>
    %31 = arith.truncf %30 : vector<256x64xf32> to vector<256x64xbf16>
    %c0_30 = arith.constant 0 : index
    %c0_31 = arith.constant 0 : index
    %32 = vector.load %arg15[%c0_30, %c0_31] : memref<256x64xbf16, #tpu.memory_space<vmem>>, vector<256x64xbf16>
    tpu.vector_store %arg15[%c0_30, %c0_31], %31 {strides = array<i32>} : memref<256x64xbf16, #tpu.memory_space<vmem>>, vector<256x64xbf16>,
    return
  }
  func.func @transform_0(%arg0: i32) -> (i32, i32) {
    %c0_i32 = arith.constant 0 : i32
    %c0_i32_0 = arith.constant 0 : i32
    return %arg0, %c0_i32 : i32, i32
  }
  func.func @transform_1(%arg0: i32) -> (i32, i32) {
    %c0_i32 = arith.constant 0 : i32
    %c0_i32_0 = arith.constant 0 : i32
    return %arg0, %c0_i32 : i32, i32
  }
  func.func @transform_2(%arg0: i32) -> (i32, i32) {
    %c0_i32 = arith.constant 0 : i32
    %c0_i32_0 = arith.constant 0 : i32
    return %arg0, %c0_i32 : i32, i32
  }
  func.func @transform_3(%arg0: i32) -> (i32, i32) {
    %c0_i32 = arith.constant 0 : i32
    %c0_i32_0 = arith.constant 0 : i32
    return %arg0, %c0_i32 : i32, i32
  }
  func.func @transform_4(%arg0: i32) -> (i32, i32) {
    %c0_i32 = arith.constant 0 : i32
    %c0_i32_0 = arith.constant 0 : i32
    %c0_i32_1 = arith.constant 0 : i32
    return %c0_i32, %c0_i32_0 : i32, i32
  }
  func.func @transform_5(%arg0: i32) -> (i32, i32) {
    %c0_i32 = arith.constant 0 : i32
    %c0_i32_0 = arith.constant 0 : i32
    %c0_i32_1 = arith.constant 0 : i32
    return %c0_i32, %c0_i32_0 : i32, i32
  }
  func.func @transform_6(%arg0: i32) -> (i32, i32) {
    %c0_i32 = arith.constant 0 : i32
    %c0_i32_0 = arith.constant 0 : i32
    %c0_i32_1 = arith.constant 0 : i32
    return %c0_i32, %c0_i32_0 : i32, i32
  }
  func.func @transform_7(%arg0: i32) -> (i32, i32) {
    %c0_i32 = arith.constant 0 : i32
    %c0_i32_0 = arith.constant 0 : i32
    %c0_i32_1 = arith.constant 0 : i32
    return %c0_i32, %c0_i32_0 : i32, i32
  }
  func.func @transform_8(%arg0: i32) -> (i32, i32) {
    %c0_i32 = arith.constant 0 : i32
    %c0_i32_0 = arith.constant 0 : i32
    %c0_i32_1 = arith.constant 0 : i32
    return %c0_i32, %c0_i32_0 : i32, i32
  }
  func.func @transform_9(%arg0: i32) -> (i32, i32) {
    %c0_i32 = arith.constant 0 : i32
    %c0_i32_0 = arith.constant 0 : i32
    %c0_i32_1 = arith.constant 0 : i32
    return %c0_i32, %c0_i32_0 : i32, i32
  }
  func.func @transform_10(%arg0: i32) -> (i32, i32) {
    %c0_i32 = arith.constant 0 : i32
    %c0_i32_0 = arith.constant 0 : i32
    %c0_i32_1 = arith.constant 0 : i32
    return %c0_i32, %c0_i32_0 : i32, i32
  }
  func.func @transform_11(%arg0: i32) -> (i32, i32) {
    %c0_i32 = arith.constant 0 : i32
    %c0_i32_0 = arith.constant 0 : i32
    return %arg0, %c0_i32 : i32, i32
  }
  func.func @transform_12(%arg0: i32) -> (i32, i32) {
    %c0_i32 = arith.constant 0 : i32
    %c0_i32_0 = arith.constant 0 : i32
    return %arg0, %c0_i32 : i32, i32
  }
  func.func @transform_13(%arg0: i32) -> (i32, i32) {
    %c0_i32 = arith.constant 0 : i32
    %c0_i32_0 = arith.constant 0 : i32
    return %arg0, %c0_i32 : i32, i32
  }
  func.func @transform_14(%arg0: i32) -> (i32, i32) {
    %c0_i32 = arith.constant 0 : i32
    %c0_i32_0 = arith.constant 0 : i32
    return %arg0, %c0_i32 : i32, i32
  }
}

</mosaic_0001>

<llo_original>
// kernel: tpu_custom_call.1
$region0: #{tpu_custom_call.1}
  #allocation0 [shape = 'u32[]', space=smem, size = 0x4, offset = 0x4, fixed_abs, tag = 'smem constant byte address 0x4 - core index']
  #allocation1 [shape = 'u32[72,128]{1,0:T(1,128)}', space=vmem, size = 0x9000, scoped, tag = 'internal scratch']
  %s0 = inlined_call_operand.vmem [shape: f32[256,64], index: 0, kind: input, shape index: {}]
  %s1 = inlined_call_operand.vmem [shape: f32[256,64], index: 1, kind: input, shape index: {}]
  %s2 = inlined_call_operand.vmem [shape: f32[256,64], index: 2, kind: input, shape index: {}]
  %s3 = inlined_call_operand.vmem [shape: f32[256,64], index: 3, kind: input, shape index: {}]
  %s4 = inlined_call_operand.vmem [shape: bf16[64,64], index: 4, kind: input, shape index: {}]
  %s5 = inlined_call_operand.vmem [shape: bf16[64,64], index: 5, kind: input, shape index: {}]
  %s6 = inlined_call_operand.vmem [shape: bf16[64,64], index: 6, kind: input, shape index: {}]
  %s7 = inlined_call_operand.vmem [shape: bf16[64,64], index: 7, kind: input, shape index: {}]
  %s8 = inlined_call_operand.vmem [shape: f32[1,64], index: 8, kind: input, shape index: {}]
  %s9 = inlined_call_operand.vmem [shape: f32[1,64], index: 9, kind: input, shape index: {}]
  %s10 = inlined_call_operand.vmem [shape: f32[1,64], index: 10, kind: input, shape index: {}]
  %s11 = inlined_call_operand.vmem [shape: bf16[256,64], index: 11, kind: output, shape index: {0}]
  %s12 = inlined_call_operand.vmem [shape: bf16[256,64], index: 12, kind: output, shape index: {1}]
  %s13 = inlined_call_operand.vmem [shape: bf16[256,64], index: 13, kind: output, shape index: {2}]
  %s14 = inlined_call_operand.vmem [shape: bf16[256,64], index: 14, kind: output, shape index: {3}]
  %15 = xla_tuple %s11, %s12, %s13, %s14
  %s16 = sld [smem:[#allocation0]]
  $region78: #{tpu_custom_call.1} parent=0
    _
  %s18 = ssub.s32 1, %s16
  %s19 = scalar_select 0, %s18, %s16
  // Predicated region
  $region2: #{tpu_custom_call.1} parent=0 // pred_check
    _
  $region3: #{tpu_custom_call.1} parent=0 // pred_check_branch
    %21 = sbr.rel (0) target = $region5
  $region4: #{tpu_custom_call.1} parent=0 // pred_region
    _
  $region5: #{tpu_custom_call.1} parent=0 // pred_fallthru
    _
  // Predicated region
  $region6: #{tpu_custom_call.1} parent=0 // pred_check
    _
  $region7: #{tpu_custom_call.1} parent=0 // pred_check_branch
    %23 = sbr.rel (0) target = $region9
  $region8: #{tpu_custom_call.1} parent=0 // pred_region
    _
  $region9: #{tpu_custom_call.1} parent=0 // pred_fallthru
    _
  // Predicated region
  $region10: #{tpu_custom_call.1} parent=0 // pred_check
    _
  $region11: #{tpu_custom_call.1} parent=0 // pred_check_branch
    %25 = sbr.rel (0) target = $region13
  $region12: #{tpu_custom_call.1} parent=0 // pred_region
    _
  $region13: #{tpu_custom_call.1} parent=0 // pred_fallthru
    _
  // Predicated region
  $region14: #{tpu_custom_call.1} parent=0 // pred_check
    _
  $region15: #{tpu_custom_call.1} parent=0 // pred_check_branch
    %27 = sbr.rel (0) target = $region17
  $region16: #{tpu_custom_call.1} parent=0 // pred_region
    _
  $region17: #{tpu_custom_call.1} parent=0 // pred_fallthru
    _
  // Predicated region
  $region18: #{tpu_custom_call.1} parent=0 // pred_check
    _
  $region19: #{tpu_custom_call.1} parent=0 // pred_check_branch
    %29 = sbr.rel (0) target = $region21
  $region20: #{tpu_custom_call.1} parent=0 // pred_region
    _
  $region21: #{tpu_custom_call.1} parent=0 // pred_fallthru
    _
  // Predicated region
  $region22: #{tpu_custom_call.1} parent=0 // pred_check
    _
  $region23: #{tpu_custom_call.1} parent=0 // pred_check_branch
    %31 = sbr.rel (0) target = $region25
  $region24: #{tpu_custom_call.1} parent=0 // pred_region
    _
  $region25: #{tpu_custom_call.1} parent=0 // pred_fallthru
    _
  // Predicated region
  $region26: #{tpu_custom_call.1} parent=0 // pred_check
    _
  $region27: #{tpu_custom_call.1} parent=0 // pred_check_branch
    %33 = sbr.rel (0) target = $region29
  $region28: #{tpu_custom_call.1} parent=0 // pred_region
    _
  $region29: #{tpu_custom_call.1} parent=0 // pred_fallthru
    _
  // Predicated region
  $region30: #{tpu_custom_call.1} parent=0 // pred_check
    _
  $region31: #{tpu_custom_call.1} parent=0 // pred_check_branch
    %35 = sbr.rel (0) target = $region33
  $region32: #{tpu_custom_call.1} parent=0 // pred_region
    _
  $region33: #{tpu_custom_call.1} parent=0 // pred_fallthru
    _
  // Predicated region
  $region34: #{tpu_custom_call.1} parent=0 // pred_check
    _
  $region35: #{tpu_custom_call.1} parent=0 // pred_check_branch
    %37 = sbr.rel (0) target = $region37
  $region36: #{tpu_custom_call.1} parent=0 // pred_region
    _
  $region37: #{tpu_custom_call.1} parent=0 // pred_fallthru
    _
  // Predicated region
  $region38: #{tpu_custom_call.1} parent=0 // pred_check
    _
  $region39: #{tpu_custom_call.1} parent=0 // pred_check_branch
    %39 = sbr.rel (0) target = $region41
  $region40: #{tpu_custom_call.1} parent=0 // pred_region
    _
  $region41: #{tpu_custom_call.1} parent=0 // pred_fallthru
    _
  // Predicated region
  $region42: #{tpu_custom_call.1} parent=0 // pred_check
    _
  $region43: #{tpu_custom_call.1} parent=0 // pred_check_branch
    %41 = sbr.rel (0) target = $region45
  $region44: #{tpu_custom_call.1} parent=0 // pred_region
    _
  $region45: #{tpu_custom_call.1} parent=0 // pred_fallthru
    _
  %v43 = vld [vmem:[%s0] sm:$0xff]
  %v44 = vld [vmem:[%s0 + $0x8] sm:$0xff]
  %v45 = vld [vmem:[%s0 + $0x10] sm:$0xff]
  %v46 = vld [vmem:[%s0 + $0x18] sm:$0xff]
  %v47 = vld [vmem:[%s0 + $0x20] sm:$0xff]
  %v48 = vld [vmem:[%s0 + $0x28] sm:$0xff]
  %v49 = vld [vmem:[%s0 + $0x30] sm:$0xff]
  %v50 = vld [vmem:[%s0 + $0x38] sm:$0xff]
  %v51 = vld [vmem:[%s0 + $0x40] sm:$0xff]
  %v52 = vld [vmem:[%s0 + $0x48] sm:$0xff]
  %v53 = vld [vmem:[%s0 + $0x50] sm:$0xff]
  %v54 = vld [vmem:[%s0 + $0x58] sm:$0xff]
  %v55 = vld [vmem:[%s0 + $0x60] sm:$0xff]
  %v56 = vld [vmem:[%s0 + $0x68] sm:$0xff]
  %v57 = vld [vmem:[%s0 + $0x70] sm:$0xff]
  %v58 = vld [vmem:[%s0 + $0x78] sm:$0xff]
  %v59 = vld [vmem:[%s0 + $0x80] sm:$0xff]
  %v60 = vld [vmem:[%s0 + $0x88] sm:$0xff]
  %v61 = vld [vmem:[%s0 + $0x90] sm:$0xff]
  %v62 = vld [vmem:[%s0 + $0x98] sm:$0xff]
  %v63 = vld [vmem:[%s0 + $0xa0] sm:$0xff]
  %v64 = vld [vmem:[%s0 + $0xa8] sm:$0xff]
  %v65 = vld [vmem:[%s0 + $0xb0] sm:$0xff]
  %v66 = vld [vmem:[%s0 + $0xb8] sm:$0xff]
  %v67 = vld [vmem:[%s0 + $0xc0] sm:$0xff]
  %v68 = vld [vmem:[%s0 + $0xc8] sm:$0xff]
  %v69 = vld [vmem:[%s0 + $0xd0] sm:$0xff]
  %v70 = vld [vmem:[%s0 + $0xd8] sm:$0xff]
  %v71 = vld [vmem:[%s0 + $0xe0] sm:$0xff]
  %v72 = vld [vmem:[%s0 + $0xe8] sm:$0xff]
  %v73 = vld [vmem:[%s0 + $0xf0] sm:$0xff]
  %v74 = vld [vmem:[%s0 + $0xf8] sm:$0xff]
  %v75 = vpack.c.bf16 %v44, %v43
  %v76 = vpack.c.bf16 %v46, %v45
  %v77 = vpack.c.bf16 %v48, %v47
  %v78 = vpack.c.bf16 %v50, %v49
  %v79 = vpack.c.bf16 %v52, %v51
  %v80 = vpack.c.bf16 %v54, %v53
  %v81 = vpack.c.bf16 %v56, %v55
  %v82 = vpack.c.bf16 %v58, %v57
  %v83 = vpack.c.bf16 %v60, %v59
  %v84 = vpack.c.bf16 %v62, %v61
  %v85 = vpack.c.bf16 %v64, %v63
  %v86 = vpack.c.bf16 %v66, %v65
  %v87 = vpack.c.bf16 %v68, %v67
  %v88 = vpack.c.bf16 %v70, %v69
  %v89 = vpack.c.bf16 %v72, %v71
  %v90 = vpack.c.bf16 %v74, %v73
  %v91 = vld [vmem:[%s1] sm:$0xff]
  %v92 = vld [vmem:[%s1 + $0x8] sm:$0xff]
  %v93 = vld [vmem:[%s1 + $0x10] sm:$0xff]
  %v94 = vld [vmem:[%s1 + $0x18] sm:$0xff]
  %v95 = vld [vmem:[%s1 + $0x20] sm:$0xff]
  %v96 = vld [vmem:[%s1 + $0x28] sm:$0xff]
  %v97 = vld [vmem:[%s1 + $0x30] sm:$0xff]
  %v98 = vld [vmem:[%s1 + $0x38] sm:$0xff]
  %v99 = vld [vmem:[%s1 + $0x40] sm:$0xff]
  %v100 = vld [vmem:[%s1 + $0x48] sm:$0xff]
  %v101 = vld [vmem:[%s1 + $0x50] sm:$0xff]
  %v102 = vld [vmem:[%s1 + $0x58] sm:$0xff]
  %v103 = vld [vmem:[%s1 + $0x60] sm:$0xff]
  %v104 = vld [vmem:[%s1 + $0x68] sm:$0xff]
  %v105 = vld [vmem:[%s1 + $0x70] sm:$0xff]
  %v106 = vld [vmem:[%s1 + $0x78] sm:$0xff]
  %v107 = vld [vmem:[%s1 + $0x80] sm:$0xff]
  %v108 = vld [vmem:[%s1 + $0x88] sm:$0xff]
  %v109 = vld [vmem:[%s1 + $0x90] sm:$0xff]
  %v110 = vld [vmem:[%s1 + $0x98] sm:$0xff]
  %v111 = vld [vmem:[%s1 + $0xa0] sm:$0xff]
  %v112 = vld [vmem:[%s1 + $0xa8] sm:$0xff]
  %v113 = vld [vmem:[%s1 + $0xb0] sm:$0xff]
  %v114 = vld [vmem:[%s1 + $0xb8] sm:$0xff]
  %v115 = vld [vmem:[%s1 + $0xc0] sm:$0xff]
  %v116 = vld [vmem:[%s1 + $0xc8] sm:$0xff]
  %v117 = vld [vmem:[%s1 + $0xd0] sm:$0xff]
  %v118 = vld [vmem:[%s1 + $0xd8] sm:$0xff]
  %v119 = vld [vmem:[%s1 + $0xe0] sm:$0xff]
  %v120 = vld [vmem:[%s1 + $0xe8] sm:$0xff]
  %v121 = vld [vmem:[%s1 + $0xf0] sm:$0xff]
  %v122 = vld [vmem:[%s1 + $0xf8] sm:$0xff]
  %v123 = vpack.c.bf16 %v92, %v91
  %v124 = vpack.c.bf16 %v94, %v93
  %v125 = vpack.c.bf16 %v96, %v95
  %v126 = vpack.c.bf16 %v98, %v97
  %v127 = vpack.c.bf16 %v100, %v99
  %v128 = vpack.c.bf16 %v102, %v101
  %v129 = vpack.c.bf16 %v104, %v103
  %v130 = vpack.c.bf16 %v106, %v105
  %v131 = vpack.c.bf16 %v108, %v107
  %v132 = vpack.c.bf16 %v110, %v109
  %v133 = vpack.c.bf16 %v112, %v111
  %v134 = vpack.c.bf16 %v114, %v113
  %v135 = vpack.c.bf16 %v116, %v115
  %v136 = vpack.c.bf16 %v118, %v117
  %v137 = vpack.c.bf16 %v120, %v119
  %v138 = vpack.c.bf16 %v122, %v121
  %v139 = vld [vmem:[%s2] sm:$0xff]
  %v140 = vld [vmem:[%s2 + $0x8] sm:$0xff]
  %v141 = vld [vmem:[%s2 + $0x10] sm:$0xff]
  %v142 = vld [vmem:[%s2 + $0x18] sm:$0xff]
  %v143 = vld [vmem:[%s2 + $0x20] sm:$0xff]
  %v144 = vld [vmem:[%s2 + $0x28] sm:$0xff]
  %v145 = vld [vmem:[%s2 + $0x30] sm:$0xff]
  %v146 = vld [vmem:[%s2 + $0x38] sm:$0xff]
  %v147 = vld [vmem:[%s2 + $0x40] sm:$0xff]
  %v148 = vld [vmem:[%s2 + $0x48] sm:$0xff]
  %v149 = vld [vmem:[%s2 + $0x50] sm:$0xff]
  %v150 = vld [vmem:[%s2 + $0x58] sm:$0xff]
  %v151 = vld [vmem:[%s2 + $0x60] sm:$0xff]
  %v152 = vld [vmem:[%s2 + $0x68] sm:$0xff]
  %v153 = vld [vmem:[%s2 + $0x70] sm:$0xff]
  %v154 = vld [vmem:[%s2 + $0x78] sm:$0xff]
  %v155 = vld [vmem:[%s2 + $0x80] sm:$0xff]
  %v156 = vld [vmem:[%s2 + $0x88] sm:$0xff]
  %v157 = vld [vmem:[%s2 + $0x90] sm:$0xff]
  %v158 = vld [vmem:[%s2 + $0x98] sm:$0xff]
  %v159 = vld [vmem:[%s2 + $0xa0] sm:$0xff]
  %v160 = vld [vmem:[%s2 + $0xa8] sm:$0xff]
  %v161 = vld [vmem:[%s2 + $0xb0] sm:$0xff]
  %v162 = vld [vmem:[%s2 + $0xb8] sm:$0xff]
  %v163 = vld [vmem:[%s2 + $0xc0] sm:$0xff]
  %v164 = vld [vmem:[%s2 + $0xc8] sm:$0xff]
  %v165 = vld [vmem:[%s2 + $0xd0] sm:$0xff]
  %v166 = vld [vmem:[%s2 + $0xd8] sm:$0xff]
  %v167 = vld [vmem:[%s2 + $0xe0] sm:$0xff]
  %v168 = vld [vmem:[%s2 + $0xe8] sm:$0xff]
  %v169 = vld [vmem:[%s2 + $0xf0] sm:$0xff]
  %v170 = vld [vmem:[%s2 + $0xf8] sm:$0xff]
  %v171 = vpack.c.bf16 %v140, %v139
  %v172 = vpack.c.bf16 %v142, %v141
  %v173 = vpack.c.bf16 %v144, %v143
  %v174 = vpack.c.bf16 %v146, %v145
  %v175 = vpack.c.bf16 %v148, %v147
  %v176 = vpack.c.bf16 %v150, %v149
  %v177 = vpack.c.bf16 %v152, %v151
  %v178 = vpack.c.bf16 %v154, %v153
  %v179 = vpack.c.bf16 %v156, %v155
  %v180 = vpack.c.bf16 %v158, %v157
  %v181 = vpack.c.bf16 %v160, %v159
  %v182 = vpack.c.bf16 %v162, %v161
  %v183 = vpack.c.bf16 %v164, %v163
  %v184 = vpack.c.bf16 %v166, %v165
  %v185 = vpack.c.bf16 %v168, %v167
  %v186 = vpack.c.bf16 %v170, %v169
  %v187 = vld [vmem:[%s3] sm:$0xff]
  %v188 = vld [vmem:[%s3 + $0x8] sm:$0xff]
  %v189 = vld [vmem:[%s3 + $0x10] sm:$0xff]
  %v190 = vld [vmem:[%s3 + $0x18] sm:$0xff]
  %v191 = vld [vmem:[%s3 + $0x20] sm:$0xff]
  %v192 = vld [vmem:[%s3 + $0x28] sm:$0xff]
  %v193 = vld [vmem:[%s3 + $0x30] sm:$0xff]
  %v194 = vld [vmem:[%s3 + $0x38] sm:$0xff]
  %v195 = vld [vmem:[%s3 + $0x40] sm:$0xff]
  %v196 = vld [vmem:[%s3 + $0x48] sm:$0xff]
  %v197 = vld [vmem:[%s3 + $0x50] sm:$0xff]
  %v198 = vld [vmem:[%s3 + $0x58] sm:$0xff]
  %v199 = vld [vmem:[%s3 + $0x60] sm:$0xff]
  %v200 = vld [vmem:[%s3 + $0x68] sm:$0xff]
  %v201 = vld [vmem:[%s3 + $0x70] sm:$0xff]
  %v202 = vld [vmem:[%s3 + $0x78] sm:$0xff]
  %v203 = vld [vmem:[%s3 + $0x80] sm:$0xff]
  %v204 = vld [vmem:[%s3 + $0x88] sm:$0xff]
  %v205 = vld [vmem:[%s3 + $0x90] sm:$0xff]
  %v206 = vld [vmem:[%s3 + $0x98] sm:$0xff]
  %v207 = vld [vmem:[%s3 + $0xa0] sm:$0xff]
  %v208 = vld [vmem:[%s3 + $0xa8] sm:$0xff]
  %v209 = vld [vmem:[%s3 + $0xb0] sm:$0xff]
  %v210 = vld [vmem:[%s3 + $0xb8] sm:$0xff]
  %v211 = vld [vmem:[%s3 + $0xc0] sm:$0xff]
  %v212 = vld [vmem:[%s3 + $0xc8] sm:$0xff]
  %v213 = vld [vmem:[%s3 + $0xd0] sm:$0xff]
  %v214 = vld [vmem:[%s3 + $0xd8] sm:$0xff]
  %v215 = vld [vmem:[%s3 + $0xe0] sm:$0xff]
  %v216 = vld [vmem:[%s3 + $0xe8] sm:$0xff]
  %v217 = vld [vmem:[%s3 + $0xf0] sm:$0xff]
  %v218 = vld [vmem:[%s3 + $0xf8] sm:$0xff]
  %v219 = vpack.c.bf16 %v188, %v187
  %v220 = vpack.c.bf16 %v190, %v189
  %v221 = vpack.c.bf16 %v192, %v191
  %v222 = vpack.c.bf16 %v194, %v193
  %v223 = vpack.c.bf16 %v196, %v195
  %v224 = vpack.c.bf16 %v198, %v197
  %v225 = vpack.c.bf16 %v200, %v199
  %v226 = vpack.c.bf16 %v202, %v201
  %v227 = vpack.c.bf16 %v204, %v203
  %v228 = vpack.c.bf16 %v206, %v205
  %v229 = vpack.c.bf16 %v208, %v207
  %v230 = vpack.c.bf16 %v210, %v209
  %v231 = vpack.c.bf16 %v212, %v211
  %v232 = vpack.c.bf16 %v214, %v213
  %v233 = vpack.c.bf16 %v216, %v215
  %v234 = vpack.c.bf16 %v218, %v217
  %v235 = vld [vmem:[%s4] sm:$0xf]
  %v236 = vld [vmem:[%s4 + $0x4] sm:$0xf]
  %v237 = vld [vmem:[%s4 + $0x8] sm:$0xf]
  %v238 = vld [vmem:[%s4 + $0xc] sm:$0xf]
  %v239 = vld [vmem:[%s4 + $0x10] sm:$0xf]
  %v240 = vld [vmem:[%s4 + $0x14] sm:$0xf]
  %v241 = vld [vmem:[%s4 + $0x18] sm:$0xf]
  %v242 = vld [vmem:[%s4 + $0x1c] sm:$0xf]
  %v243 = vld [vmem:[%s8] sm:$0x1]
  %v245 = vperm.slane %v243, 0
  %v255 = vunpack.c.l.b16 %v235
  %v256 = vunpack.c.l.b16 %v236
  %v257 = vunpack.c.l.b16 %v237
  %v258 = vunpack.c.l.b16 %v238
  %v259 = vunpack.c.l.b16 %v239
  %v260 = vunpack.c.l.b16 %v240
  %v261 = vunpack.c.l.b16 %v241
  %v262 = vunpack.c.l.b16 %v242
  %v263 = vpack.c.b16 %v256, %v255
  %v264 = vpack.c.b16 %v258, %v257
  %v265 = vpack.c.b16 %v260, %v259
  %v266 = vpack.c.b16 %v262, %v261
  %vm271 = vcmask 523264
  %v273 = vsel %vm271, %v75, 0
  %v276 = vsel %vm271, %v76, 0
  %v279 = vsel %vm271, %v77, 0
  %v282 = vsel %vm271, %v78, 0
  %v285 = vsel %vm271, %v79, 0
  %v288 = vsel %vm271, %v80, 0
  %v291 = vsel %vm271, %v81, 0
  %v294 = vsel %vm271, %v82, 0
  %v297 = vsel %vm271, %v83, 0
  %v300 = vsel %vm271, %v84, 0
  %v303 = vsel %vm271, %v85, 0
  %v306 = vsel %vm271, %v86, 0
  %v309 = vsel %vm271, %v87, 0
  %v312 = vsel %vm271, %v88, 0
  %v315 = vsel %vm271, %v89, 0
  %v318 = vsel %vm271, %v90, 0
  %320 = vmatpush.bf16.msra.mxu0 0
  %321 = vmatpush.bf16.msra.mxu0 0
  %322 = vmatpush.bf16.msra.mxu0 0
  %323 = vmatpush.bf16.msra.mxu0 0
  %324 = vmatpush.bf16.msra.mxu0 %v266
  %325 = vmatpush.bf16.msra.mxu0 %v265
  %326 = vmatpush.bf16.msra.mxu0 %v264
  %327 = vmatpush.bf16.msra.mxu0 %v263
  %328 = vmatmul.bf16.gmra.mxu0 %v273
  %v329 = vpop.f32.mrf.mxu0
  %v330 = vadd.f32 %v245, %v329
  %v331 = vpop.f32.mrf.mxu0
  %v332 = vadd.f32 %v245, %v331
  %333 = vmatmul.bf16.gmra.mxu0 %v276
  %v334 = vpop.f32.mrf.mxu0
  %v335 = vadd.f32 %v245, %v334
  %v336 = vpop.f32.mrf.mxu0
  %v337 = vadd.f32 %v245, %v336
  %338 = vmatmul.bf16.gmra.mxu0 %v279
  %v339 = vpop.f32.mrf.mxu0
  %v340 = vadd.f32 %v245, %v339
  %v341 = vpop.f32.mrf.mxu0
  %v342 = vadd.f32 %v245, %v341
  %343 = vmatmul.bf16.gmra.mxu0 %v282
  %v344 = vpop.f32.mrf.mxu0
  %v345 = vadd.f32 %v245, %v344
  %v346 = vpop.f32.mrf.mxu0
  %v347 = vadd.f32 %v245, %v346
  %348 = vmatmul.bf16.gmra.mxu0 %v285
  %v349 = vpop.f32.mrf.mxu0
  %v350 = vadd.f32 %v245, %v349
  %v351 = vpop.f32.mrf.mxu0
  %v352 = vadd.f32 %v245, %v351
  %353 = vmatmul.bf16.gmra.mxu0 %v288
  %v354 = vpop.f32.mrf.mxu0
  %v355 = vadd.f32 %v245, %v354
  %v356 = vpop.f32.mrf.mxu0
  %v357 = vadd.f32 %v245, %v356
  %358 = vmatmul.bf16.gmra.mxu0 %v291
  %v359 = vpop.f32.mrf.mxu0
  %v360 = vadd.f32 %v245, %v359
  %v361 = vpop.f32.mrf.mxu0
  %v362 = vadd.f32 %v245, %v361
  %363 = vmatmul.bf16.gmra.mxu0 %v294
  %v364 = vpop.f32.mrf.mxu0
  %v365 = vadd.f32 %v245, %v364
  %v366 = vpop.f32.mrf.mxu0
  %v367 = vadd.f32 %v245, %v366
  %368 = vmatmul.bf16.gmra.mxu0 %v297
  %v369 = vpop.f32.mrf.mxu0
  %v370 = vadd.f32 %v245, %v369
  %v371 = vpop.f32.mrf.mxu0
  %v372 = vadd.f32 %v245, %v371
  %373 = vmatmul.bf16.gmra.mxu0 %v300
  %v374 = vpop.f32.mrf.mxu0
  %v375 = vadd.f32 %v245, %v374
  %v376 = vpop.f32.mrf.mxu0
  %v377 = vadd.f32 %v245, %v376
  %378 = vmatmul.bf16.gmra.mxu0 %v303
  %v379 = vpop.f32.mrf.mxu0
  %v380 = vadd.f32 %v245, %v379
  %v381 = vpop.f32.mrf.mxu0
  %v382 = vadd.f32 %v245, %v381
  %383 = vmatmul.bf16.gmra.mxu0 %v306
  %v384 = vpop.f32.mrf.mxu0
  %v385 = vadd.f32 %v245, %v384
  %v386 = vpop.f32.mrf.mxu0
  %v387 = vadd.f32 %v245, %v386
  %388 = vmatmul.bf16.gmra.mxu0 %v309
  %v389 = vpop.f32.mrf.mxu0
  %v390 = vadd.f32 %v245, %v389
  %v391 = vpop.f32.mrf.mxu0
  %v392 = vadd.f32 %v245, %v391
  %393 = vmatmul.bf16.gmra.mxu0 %v312
  %v394 = vpop.f32.mrf.mxu0
  %v395 = vadd.f32 %v245, %v394
  %v396 = vpop.f32.mrf.mxu0
  %v397 = vadd.f32 %v245, %v396
  %398 = vmatmul.bf16.gmra.mxu0 %v315
  %v399 = vpop.f32.mrf.mxu0
  %v400 = vadd.f32 %v245, %v399
  %v401 = vpop.f32.mrf.mxu0
  %v402 = vadd.f32 %v245, %v401
  %403 = vmatmul.bf16.gmra.mxu0 %v318
  %v404 = vpop.f32.mrf.mxu0
  %v405 = vadd.f32 %v245, %v404
  %v406 = vpop.f32.mrf.mxu0
  %v407 = vadd.f32 %v245, %v406
  %408 = vdwg.mxu0
  %v409 = vpack.c.bf16 %v330, %v330
  %v410 = vpack.c.bf16 %v332, %v332
  %v411 = vpack.c.bf16 %v335, %v335
  %v412 = vpack.c.bf16 %v337, %v337
  %v413 = vpack.c.bf16 %v340, %v340
  %v414 = vpack.c.bf16 %v342, %v342
  %v415 = vpack.c.bf16 %v345, %v345
  %v416 = vpack.c.bf16 %v347, %v347
  %v417 = vpack.c.bf16 %v350, %v350
  %v418 = vpack.c.bf16 %v352, %v352
  %v419 = vpack.c.bf16 %v355, %v355
  %v420 = vpack.c.bf16 %v357, %v357
  %v421 = vpack.c.bf16 %v360, %v360
  %v422 = vpack.c.bf16 %v362, %v362
  %v423 = vpack.c.bf16 %v365, %v365
  %v424 = vpack.c.bf16 %v367, %v367
  %v425 = vpack.c.bf16 %v370, %v370
  %v426 = vpack.c.bf16 %v372, %v372
  %v427 = vpack.c.bf16 %v375, %v375
  %v428 = vpack.c.bf16 %v377, %v377
  %v429 = vpack.c.bf16 %v380, %v380
  %v430 = vpack.c.bf16 %v382, %v382
  %v431 = vpack.c.bf16 %v385, %v385
  %v432 = vpack.c.bf16 %v387, %v387
  %v433 = vpack.c.bf16 %v390, %v390
  %v434 = vpack.c.bf16 %v392, %v392
  %v435 = vpack.c.bf16 %v395, %v395
  %v436 = vpack.c.bf16 %v397, %v397
  %v437 = vpack.c.bf16 %v400, %v400
  %v438 = vpack.c.bf16 %v402, %v402
  %v439 = vpack.c.bf16 %v405, %v405
  %v440 = vpack.c.bf16 %v407, %v407
  %vm441 = vcmask 519168
  %442 = vst.msk [vmem:[%s11] sm:$0xf] %vm441, %v409
  %443 = vst.msk [vmem:[%s11 + $0x4] sm:$0xf] %vm441, %v410
  %444 = vst.msk [vmem:[%s11 + $0x8] sm:$0xf] %vm441, %v411
  %445 = vst.msk [vmem:[%s11 + $0xc] sm:$0xf] %vm441, %v412
  %446 = vst.msk [vmem:[%s11 + $0x10] sm:$0xf] %vm441, %v413
  %447 = vst.msk [vmem:[%s11 + $0x14] sm:$0xf] %vm441, %v414
  %448 = vst.msk [vmem:[%s11 + $0x18] sm:$0xf] %vm441, %v415
  %449 = vst.msk [vmem:[%s11 + $0x1c] sm:$0xf] %vm441, %v416
  %450 = vst.msk [vmem:[%s11 + $0x20] sm:$0xf] %vm441, %v417
  %451 = vst.msk [vmem:[%s11 + $0x24] sm:$0xf] %vm441, %v418
  %452 = vst.msk [vmem:[%s11 + $0x28] sm:$0xf] %vm441, %v419
  %453 = vst.msk [vmem:[%s11 + $0x2c] sm:$0xf] %vm441, %v420
  %454 = vst.msk [vmem:[%s11 + $0x30] sm:$0xf] %vm441, %v421
  %455 = vst.msk [vmem:[%s11 + $0x34] sm:$0xf] %vm441, %v422
  %456 = vst.msk [vmem:[%s11 + $0x38] sm:$0xf] %vm441, %v423
  %457 = vst.msk [vmem:[%s11 + $0x3c] sm:$0xf] %vm441, %v424
  %458 = vst.msk [vmem:[%s11 + $0x40] sm:$0xf] %vm441, %v425
  %459 = vst.msk [vmem:[%s11 + $0x44] sm:$0xf] %vm441, %v426
  %460 = vst.msk [vmem:[%s11 + $0x48] sm:$0xf] %vm441, %v427
  %461 = vst.msk [vmem:[%s11 + $0x4c] sm:$0xf] %vm441, %v428
  %462 = vst.msk [vmem:[%s11 + $0x50] sm:$0xf] %vm441, %v429
  %463 = vst.msk [vmem:[%s11 + $0x54] sm:$0xf] %vm441, %v430
  %464 = vst.msk [vmem:[%s11 + $0x58] sm:$0xf] %vm441, %v431
  %465 = vst.msk [vmem:[%s11 + $0x5c] sm:$0xf] %vm441, %v432
  %466 = vst.msk [vmem:[%s11 + $0x60] sm:$0xf] %vm441, %v433
  %467 = vst.msk [vmem:[%s11 + $0x64] sm:$0xf] %vm441, %v434
  %468 = vst.msk [vmem:[%s11 + $0x68] sm:$0xf] %vm441, %v435
  %469 = vst.msk [vmem:[%s11 + $0x6c] sm:$0xf] %vm441, %v436
  %470 = vst.msk [vmem:[%s11 + $0x70] sm:$0xf] %vm441, %v437
  %471 = vst.msk [vmem:[%s11 + $0x74] sm:$0xf] %vm441, %v438
  %472 = vst.msk [vmem:[%s11 + $0x78] sm:$0xf] %vm441, %v439
  %473 = vst.msk [vmem:[%s11 + $0x7c] sm:$0xf] %vm441, %v440
  %v474 = vld [vmem:[%s5] sm:$0xf]
  %v475 = vld [vmem:[%s5 + $0x4] sm:$0xf]
  %v476 = vld [vmem:[%s5 + $0x8] sm:$0xf]
  %v477 = vld [vmem:[%s5 + $0xc] sm:$0xf]
  %v478 = vld [vmem:[%s5 + $0x10] sm:$0xf]
  %v479 = vld [vmem:[%s5 + $0x14] sm:$0xf]
  %v480 = vld [vmem:[%s5 + $0x18] sm:$0xf]
  %v481 = vld [vmem:[%s5 + $0x1c] sm:$0xf]
  %v482 = vld [vmem:[%s9] sm:$0x1]
  %v484 = vperm.slane %v482, 0
  %v494 = vunpack.c.l.b16 %v474
  %v495 = vunpack.c.l.b16 %v475
  %v496 = vunpack.c.l.b16 %v476
  %v497 = vunpack.c.l.b16 %v477
  %v498 = vunpack.c.l.b16 %v478
  %v499 = vunpack.c.l.b16 %v479
  %v500 = vunpack.c.l.b16 %v480
  %v501 = vunpack.c.l.b16 %v481
  %v502 = vpack.c.b16 %v495, %v494
  %v503 = vpack.c.b16 %v497, %v496
  %v504 = vpack.c.b16 %v499, %v498
  %v505 = vpack.c.b16 %v501, %v500
  %v511 = vsel %vm271, %v123, 0
  %v514 = vsel %vm271, %v124, 0
  %v517 = vsel %vm271, %v125, 0
  %v520 = vsel %vm271, %v126, 0
  %v523 = vsel %vm271, %v127, 0
  %v526 = vsel %vm271, %v128, 0
  %v529 = vsel %vm271, %v129, 0
  %v532 = vsel %vm271, %v130, 0
  %v535 = vsel %vm271, %v131, 0
  %v538 = vsel %vm271, %v132, 0
  %v541 = vsel %vm271, %v133, 0
  %v544 = vsel %vm271, %v134, 0
  %v547 = vsel %vm271, %v135, 0
  %v550 = vsel %vm271, %v136, 0
  %v553 = vsel %vm271, %v137, 0
  %v556 = vsel %vm271, %v138, 0
  %558 = vmatpush.bf16.msra.mxu0 0
  %559 = vmatpush.bf16.msra.mxu0 0
  %560 = vmatpush.bf16.msra.mxu0 0
  %561 = vmatpush.bf16.msra.mxu0 0
  %562 = vmatpush.bf16.msra.mxu0 %v505
  %563 = vmatpush.bf16.msra.mxu0 %v504
  %564 = vmatpush.bf16.msra.mxu0 %v503
  %565 = vmatpush.bf16.msra.mxu0 %v502
  %566 = vmatmul.bf16.gmra.mxu0 %v511
  %v567 = vpop.f32.mrf.mxu0
  %v568 = vadd.f32 %v484, %v567
  %v569 = vpop.f32.mrf.mxu0
  %v570 = vadd.f32 %v484, %v569
  %571 = vmatmul.bf16.gmra.mxu0 %v514
  %v572 = vpop.f32.mrf.mxu0
  %v573 = vadd.f32 %v484, %v572
  %v574 = vpop.f32.mrf.mxu0
  %v575 = vadd.f32 %v484, %v574
  %576 = vmatmul.bf16.gmra.mxu0 %v517
  %v577 = vpop.f32.mrf.mxu0
  %v578 = vadd.f32 %v484, %v577
  %v579 = vpop.f32.mrf.mxu0
  %v580 = vadd.f32 %v484, %v579
  %581 = vmatmul.bf16.gmra.mxu0 %v520
  %v582 = vpop.f32.mrf.mxu0
  %v583 = vadd.f32 %v484, %v582
  %v584 = vpop.f32.mrf.mxu0
  %v585 = vadd.f32 %v484, %v584
  %586 = vmatmul.bf16.gmra.mxu0 %v523
  %v587 = vpop.f32.mrf.mxu0
  %v588 = vadd.f32 %v484, %v587
  %v589 = vpop.f32.mrf.mxu0
  %v590 = vadd.f32 %v484, %v589
  %591 = vmatmul.bf16.gmra.mxu0 %v526
  %v592 = vpop.f32.mrf.mxu0
  %v593 = vadd.f32 %v484, %v592
  %v594 = vpop.f32.mrf.mxu0
  %v595 = vadd.f32 %v484, %v594
  %596 = vmatmul.bf16.gmra.mxu0 %v529
  %v597 = vpop.f32.mrf.mxu0
  %v598 = vadd.f32 %v484, %v597
  %v599 = vpop.f32.mrf.mxu0
  %v600 = vadd.f32 %v484, %v599
  %601 = vmatmul.bf16.gmra.mxu0 %v532
  %v602 = vpop.f32.mrf.mxu0
  %v603 = vadd.f32 %v484, %v602
  %v604 = vpop.f32.mrf.mxu0
  %v605 = vadd.f32 %v484, %v604
  %606 = vmatmul.bf16.gmra.mxu0 %v535
  %v607 = vpop.f32.mrf.mxu0
  %v608 = vadd.f32 %v484, %v607
  %v609 = vpop.f32.mrf.mxu0
  %v610 = vadd.f32 %v484, %v609
  %611 = vmatmul.bf16.gmra.mxu0 %v538
  %v612 = vpop.f32.mrf.mxu0
  %v613 = vadd.f32 %v484, %v612
  %v614 = vpop.f32.mrf.mxu0
  %v615 = vadd.f32 %v484, %v614
  %616 = vmatmul.bf16.gmra.mxu0 %v541
  %v617 = vpop.f32.mrf.mxu0
  %v618 = vadd.f32 %v484, %v617
  %v619 = vpop.f32.mrf.mxu0
  %v620 = vadd.f32 %v484, %v619
  %621 = vmatmul.bf16.gmra.mxu0 %v544
  %v622 = vpop.f32.mrf.mxu0
  %v623 = vadd.f32 %v484, %v622
  %v624 = vpop.f32.mrf.mxu0
  %v625 = vadd.f32 %v484, %v624
  %626 = vmatmul.bf16.gmra.mxu0 %v547
  %v627 = vpop.f32.mrf.mxu0
  %v628 = vadd.f32 %v484, %v627
  %v629 = vpop.f32.mrf.mxu0
  %v630 = vadd.f32 %v484, %v629
  %631 = vmatmul.bf16.gmra.mxu0 %v550
  %v632 = vpop.f32.mrf.mxu0
  %v633 = vadd.f32 %v484, %v632
  %v634 = vpop.f32.mrf.mxu0
  %v635 = vadd.f32 %v484, %v634
  %636 = vmatmul.bf16.gmra.mxu0 %v553
  %v637 = vpop.f32.mrf.mxu0
  %v638 = vadd.f32 %v484, %v637
  %v639 = vpop.f32.mrf.mxu0
  %v640 = vadd.f32 %v484, %v639
  %641 = vmatmul.bf16.gmra.mxu0 %v556
  %v642 = vpop.f32.mrf.mxu0
  %v643 = vadd.f32 %v484, %v642
  %v644 = vpop.f32.mrf.mxu0
  %v645 = vadd.f32 %v484, %v644
  %646 = vdwg.mxu0
  %v647 = vpack.c.bf16 %v568, %v568
  %v648 = vpack.c.bf16 %v570, %v570
  %v649 = vpack.c.bf16 %v573, %v573
  %v650 = vpack.c.bf16 %v575, %v575
  %v651 = vpack.c.bf16 %v578, %v578
  %v652 = vpack.c.bf16 %v580, %v580
  %v653 = vpack.c.bf16 %v583, %v583
  %v654 = vpack.c.bf16 %v585, %v585
  %v655 = vpack.c.bf16 %v588, %v588
  %v656 = vpack.c.bf16 %v590, %v590
  %v657 = vpack.c.bf16 %v593, %v593
  %v658 = vpack.c.bf16 %v595, %v595
  %v659 = vpack.c.bf16 %v598, %v598
  %v660 = vpack.c.bf16 %v600, %v600
  %v661 = vpack.c.bf16 %v603, %v603
  %v662 = vpack.c.bf16 %v605, %v605
  %v663 = vpack.c.bf16 %v608, %v608
  %v664 = vpack.c.bf16 %v610, %v610
  %v665 = vpack.c.bf16 %v613, %v613
  %v666 = vpack.c.bf16 %v615, %v615
  %v667 = vpack.c.bf16 %v618, %v618
  %v668 = vpack.c.bf16 %v620, %v620
  %v669 = vpack.c.bf16 %v623, %v623
  %v670 = vpack.c.bf16 %v625, %v625
  %v671 = vpack.c.bf16 %v628, %v628
  %v672 = vpack.c.bf16 %v630, %v630
  %v673 = vpack.c.bf16 %v633, %v633
  %v674 = vpack.c.bf16 %v635, %v635
  %v675 = vpack.c.bf16 %v638, %v638
  %v676 = vpack.c.bf16 %v640, %v640
  %v677 = vpack.c.bf16 %v643, %v643
  %v678 = vpack.c.bf16 %v645, %v645
  %679 = vst.msk [vmem:[%s12] sm:$0xf] %vm441, %v647
  %680 = vst.msk [vmem:[%s12 + $0x4] sm:$0xf] %vm441, %v648
  %681 = vst.msk [vmem:[%s12 + $0x8] sm:$0xf] %vm441, %v649
  %682 = vst.msk [vmem:[%s12 + $0xc] sm:$0xf] %vm441, %v650
  %683 = vst.msk [vmem:[%s12 + $0x10] sm:$0xf] %vm441, %v651
  %684 = vst.msk [vmem:[%s12 + $0x14] sm:$0xf] %vm441, %v652
  %685 = vst.msk [vmem:[%s12 + $0x18] sm:$0xf] %vm441, %v653
  %686 = vst.msk [vmem:[%s12 + $0x1c] sm:$0xf] %vm441, %v654
  %687 = vst.msk [vmem:[%s12 + $0x20] sm:$0xf] %vm441, %v655
  %688 = vst.msk [vmem:[%s12 + $0x24] sm:$0xf] %vm441, %v656
  %689 = vst.msk [vmem:[%s12 + $0x28] sm:$0xf] %vm441, %v657
  %690 = vst.msk [vmem:[%s12 + $0x2c] sm:$0xf] %vm441, %v658
  %691 = vst.msk [vmem:[%s12 + $0x30] sm:$0xf] %vm441, %v659
  %692 = vst.msk [vmem:[%s12 + $0x34] sm:$0xf] %vm441, %v660
  %693 = vst.msk [vmem:[%s12 + $0x38] sm:$0xf] %vm441, %v661
  %694 = vst.msk [vmem:[%s12 + $0x3c] sm:$0xf] %vm441, %v662
  %695 = vst.msk [vmem:[%s12 + $0x40] sm:$0xf] %vm441, %v663
  %696 = vst.msk [vmem:[%s12 + $0x44] sm:$0xf] %vm441, %v664
  %697 = vst.msk [vmem:[%s12 + $0x48] sm:$0xf] %vm441, %v665
  %698 = vst.msk [vmem:[%s12 + $0x4c] sm:$0xf] %vm441, %v666
  %699 = vst.msk [vmem:[%s12 + $0x50] sm:$0xf] %vm441, %v667
  %700 = vst.msk [vmem:[%s12 + $0x54] sm:$0xf] %vm441, %v668
  %701 = vst.msk [vmem:[%s12 + $0x58] sm:$0xf] %vm441, %v669
  %702 = vst.msk [vmem:[%s12 + $0x5c] sm:$0xf] %vm441, %v670
  %703 = vst.msk [vmem:[%s12 + $0x60] sm:$0xf] %vm441, %v671
  %704 = vst.msk [vmem:[%s12 + $0x64] sm:$0xf] %vm441, %v672
  %705 = vst.msk [vmem:[%s12 + $0x68] sm:$0xf] %vm441, %v673
  %706 = vst.msk [vmem:[%s12 + $0x6c] sm:$0xf] %vm441, %v674
  %707 = vst.msk [vmem:[%s12 + $0x70] sm:$0xf] %vm441, %v675
  %708 = vst.msk [vmem:[%s12 + $0x74] sm:$0xf] %vm441, %v676
  %709 = vst.msk [vmem:[%s12 + $0x78] sm:$0xf] %vm441, %v677
  %710 = vst.msk [vmem:[%s12 + $0x7c] sm:$0xf] %vm441, %v678
  %v711 = vld [vmem:[%s6] sm:$0xf]
  %v712 = vld [vmem:[%s6 + $0x4] sm:$0xf]
  %v713 = vld [vmem:[%s6 + $0x8] sm:$0xf]
  %v714 = vld [vmem:[%s6 + $0xc] sm:$0xf]
  %v715 = vld [vmem:[%s6 + $0x10] sm:$0xf]
  %v716 = vld [vmem:[%s6 + $0x14] sm:$0xf]
  %v717 = vld [vmem:[%s6 + $0x18] sm:$0xf]
  %v718 = vld [vmem:[%s6 + $0x1c] sm:$0xf]
  %v719 = vld [vmem:[%s10] sm:$0x1]
  %v721 = vperm.slane %v719, 0
  %v731 = vunpack.c.l.b16 %v711
  %v732 = vunpack.c.l.b16 %v712
  %v733 = vunpack.c.l.b16 %v713
  %v734 = vunpack.c.l.b16 %v714
  %v735 = vunpack.c.l.b16 %v715
  %v736 = vunpack.c.l.b16 %v716
  %v737 = vunpack.c.l.b16 %v717
  %v738 = vunpack.c.l.b16 %v718
  %v739 = vpack.c.b16 %v732, %v731
  %v740 = vpack.c.b16 %v734, %v733
  %v741 = vpack.c.b16 %v736, %v735
  %v742 = vpack.c.b16 %v738, %v737
  %v748 = vsel %vm271, %v171, 0
  %v751 = vsel %vm271, %v172, 0
  %v754 = vsel %vm271, %v173, 0
  %v757 = vsel %vm271, %v174, 0
  %v760 = vsel %vm271, %v175, 0
  %v763 = vsel %vm271, %v176, 0
  %v766 = vsel %vm271, %v177, 0
  %v769 = vsel %vm271, %v178, 0
  %v772 = vsel %vm271, %v179, 0
  %v775 = vsel %vm271, %v180, 0
  %v778 = vsel %vm271, %v181, 0
  %v781 = vsel %vm271, %v182, 0
  %v784 = vsel %vm271, %v183, 0
  %v787 = vsel %vm271, %v184, 0
  %v790 = vsel %vm271, %v185, 0
  %v793 = vsel %vm271, %v186, 0
  %795 = vmatpush.bf16.msra.mxu0 0
  %796 = vmatpush.bf16.msra.mxu0 0
  %797 = vmatpush.bf16.msra.mxu0 0
  %798 = vmatpush.bf16.msra.mxu0 0
  %799 = vmatpush.bf16.msra.mxu0 %v742
  %800 = vmatpush.bf16.msra.mxu0 %v741
  %801 = vmatpush.bf16.msra.mxu0 %v740
  %802 = vmatpush.bf16.msra.mxu0 %v739
  %803 = vmatmul.bf16.gmra.mxu0 %v748
  %v804 = vpop.f32.mrf.mxu0
  %v805 = vadd.f32 %v721, %v804
  %v806 = vpop.f32.mrf.mxu0
  %v807 = vadd.f32 %v721, %v806
  %808 = vmatmul.bf16.gmra.mxu0 %v751
  %v809 = vpop.f32.mrf.mxu0
  %v810 = vadd.f32 %v721, %v809
  %v811 = vpop.f32.mrf.mxu0
  %v812 = vadd.f32 %v721, %v811
  %813 = vmatmul.bf16.gmra.mxu0 %v754
  %v814 = vpop.f32.mrf.mxu0
  %v815 = vadd.f32 %v721, %v814
  %v816 = vpop.f32.mrf.mxu0
  %v817 = vadd.f32 %v721, %v816
  %818 = vmatmul.bf16.gmra.mxu0 %v757
  %v819 = vpop.f32.mrf.mxu0
  %v820 = vadd.f32 %v721, %v819
  %v821 = vpop.f32.mrf.mxu0
  %v822 = vadd.f32 %v721, %v821
  %823 = vmatmul.bf16.gmra.mxu0 %v760
  %v824 = vpop.f32.mrf.mxu0
  %v825 = vadd.f32 %v721, %v824
  %v826 = vpop.f32.mrf.mxu0
  %v827 = vadd.f32 %v721, %v826
  %828 = vmatmul.bf16.gmra.mxu0 %v763
  %v829 = vpop.f32.mrf.mxu0
  %v830 = vadd.f32 %v721, %v829
  %v831 = vpop.f32.mrf.mxu0
  %v832 = vadd.f32 %v721, %v831
  %833 = vmatmul.bf16.gmra.mxu0 %v766
  %v834 = vpop.f32.mrf.mxu0
  %v835 = vadd.f32 %v721, %v834
  %v836 = vpop.f32.mrf.mxu0
  %v837 = vadd.f32 %v721, %v836
  %838 = vmatmul.bf16.gmra.mxu0 %v769
  %v839 = vpop.f32.mrf.mxu0
  %v840 = vadd.f32 %v721, %v839
  %v841 = vpop.f32.mrf.mxu0
  %v842 = vadd.f32 %v721, %v841
  %843 = vmatmul.bf16.gmra.mxu0 %v772
  %v844 = vpop.f32.mrf.mxu0
  %v845 = vadd.f32 %v721, %v844
  %v846 = vpop.f32.mrf.mxu0
  %v847 = vadd.f32 %v721, %v846
  %848 = vmatmul.bf16.gmra.mxu0 %v775
  %v849 = vpop.f32.mrf.mxu0
  %v850 = vadd.f32 %v721, %v849
  %v851 = vpop.f32.mrf.mxu0
  %v852 = vadd.f32 %v721, %v851
  %853 = vmatmul.bf16.gmra.mxu0 %v778
  %v854 = vpop.f32.mrf.mxu0
  %v855 = vadd.f32 %v721, %v854
  %v856 = vpop.f32.mrf.mxu0
  %v857 = vadd.f32 %v721, %v856
  %858 = vmatmul.bf16.gmra.mxu0 %v781
  %v859 = vpop.f32.mrf.mxu0
  %v860 = vadd.f32 %v721, %v859
  %v861 = vpop.f32.mrf.mxu0
  %v862 = vadd.f32 %v721, %v861
  %863 = vmatmul.bf16.gmra.mxu0 %v784
  %v864 = vpop.f32.mrf.mxu0
  %v865 = vadd.f32 %v721, %v864
  %v866 = vpop.f32.mrf.mxu0
  %v867 = vadd.f32 %v721, %v866
  %868 = vmatmul.bf16.gmra.mxu0 %v787
  %v869 = vpop.f32.mrf.mxu0
  %v870 = vadd.f32 %v721, %v869
  %v871 = vpop.f32.mrf.mxu0
  %v872 = vadd.f32 %v721, %v871
  %873 = vmatmul.bf16.gmra.mxu0 %v790
  %v874 = vpop.f32.mrf.mxu0
  %v875 = vadd.f32 %v721, %v874
  %v876 = vpop.f32.mrf.mxu0
  %v877 = vadd.f32 %v721, %v876
  %878 = vmatmul.bf16.gmra.mxu0 %v793
  %v879 = vpop.f32.mrf.mxu0
  %v880 = vadd.f32 %v721, %v879
  %v881 = vpop.f32.mrf.mxu0
  %v882 = vadd.f32 %v721, %v881
  %883 = vdwg.mxu0
  %v884 = vpack.c.bf16 %v805, %v805
  %v885 = vpack.c.bf16 %v807, %v807
  %v886 = vpack.c.bf16 %v810, %v810
  %v887 = vpack.c.bf16 %v812, %v812
  %v888 = vpack.c.bf16 %v815, %v815
  %v889 = vpack.c.bf16 %v817, %v817
  %v890 = vpack.c.bf16 %v820, %v820
  %v891 = vpack.c.bf16 %v822, %v822
  %v892 = vpack.c.bf16 %v825, %v825
  %v893 = vpack.c.bf16 %v827, %v827
  %v894 = vpack.c.bf16 %v830, %v830
  %v895 = vpack.c.bf16 %v832, %v832
  %v896 = vpack.c.bf16 %v835, %v835
  %v897 = vpack.c.bf16 %v837, %v837
  %v898 = vpack.c.bf16 %v840, %v840
  %v899 = vpack.c.bf16 %v842, %v842
  %v900 = vpack.c.bf16 %v845, %v845
  %v901 = vpack.c.bf16 %v847, %v847
  %v902 = vpack.c.bf16 %v850, %v850
  %v903 = vpack.c.bf16 %v852, %v852
  %v904 = vpack.c.bf16 %v855, %v855
  %v905 = vpack.c.bf16 %v857, %v857
  %v906 = vpack.c.bf16 %v860, %v860
  %v907 = vpack.c.bf16 %v862, %v862
  %v908 = vpack.c.bf16 %v865, %v865
  %v909 = vpack.c.bf16 %v867, %v867
  %v910 = vpack.c.bf16 %v870, %v870
  %v911 = vpack.c.bf16 %v872, %v872
  %v912 = vpack.c.bf16 %v875, %v875
  %v913 = vpack.c.bf16 %v877, %v877
  %v914 = vpack.c.bf16 %v880, %v880
  %v915 = vpack.c.bf16 %v882, %v882
  %916 = vst.msk [vmem:[%s13] sm:$0xf] %vm441, %v884
  %917 = vst.msk [vmem:[%s13 + $0x4] sm:$0xf] %vm441, %v885
  %918 = vst.msk [vmem:[%s13 + $0x8] sm:$0xf] %vm441, %v886
  %919 = vst.msk [vmem:[%s13 + $0xc] sm:$0xf] %vm441, %v887
  %920 = vst.msk [vmem:[%s13 + $0x10] sm:$0xf] %vm441, %v888
  %921 = vst.msk [vmem:[%s13 + $0x14] sm:$0xf] %vm441, %v889
  %922 = vst.msk [vmem:[%s13 + $0x18] sm:$0xf] %vm441, %v890
  %923 = vst.msk [vmem:[%s13 + $0x1c] sm:$0xf] %vm441, %v891
  %924 = vst.msk [vmem:[%s13 + $0x20] sm:$0xf] %vm441, %v892
  %925 = vst.msk [vmem:[%s13 + $0x24] sm:$0xf] %vm441, %v893
  %926 = vst.msk [vmem:[%s13 + $0x28] sm:$0xf] %vm441, %v894
  %927 = vst.msk [vmem:[%s13 + $0x2c] sm:$0xf] %vm441, %v895
  %928 = vst.msk [vmem:[%s13 + $0x30] sm:$0xf] %vm441, %v896
  %929 = vst.msk [vmem:[%s13 + $0x34] sm:$0xf] %vm441, %v897
  %930 = vst.msk [vmem:[%s13 + $0x38] sm:$0xf] %vm441, %v898
  %931 = vst.msk [vmem:[%s13 + $0x3c] sm:$0xf] %vm441, %v899
  %932 = vst.msk [vmem:[%s13 + $0x40] sm:$0xf] %vm441, %v900
  %933 = vst.msk [vmem:[%s13 + $0x44] sm:$0xf] %vm441, %v901
  %934 = vst.msk [vmem:[%s13 + $0x48] sm:$0xf] %vm441, %v902
  %935 = vst.msk [vmem:[%s13 + $0x4c] sm:$0xf] %vm441, %v903
  %936 = vst.msk [vmem:[%s13 + $0x50] sm:$0xf] %vm441, %v904
  %937 = vst.msk [vmem:[%s13 + $0x54] sm:$0xf] %vm441, %v905
  %938 = vst.msk [vmem:[%s13 + $0x58] sm:$0xf] %vm441, %v906
  %939 = vst.msk [vmem:[%s13 + $0x5c] sm:$0xf] %vm441, %v907
  %940 = vst.msk [vmem:[%s13 + $0x60] sm:$0xf] %vm441, %v908
  %941 = vst.msk [vmem:[%s13 + $0x64] sm:$0xf] %vm441, %v909
  %942 = vst.msk [vmem:[%s13 + $0x68] sm:$0xf] %vm441, %v910
  %943 = vst.msk [vmem:[%s13 + $0x6c] sm:$0xf] %vm441, %v911
  %944 = vst.msk [vmem:[%s13 + $0x70] sm:$0xf] %vm441, %v912
  %945 = vst.msk [vmem:[%s13 + $0x74] sm:$0xf] %vm441, %v913
  %946 = vst.msk [vmem:[%s13 + $0x78] sm:$0xf] %vm441, %v914
  %947 = vst.msk [vmem:[%s13 + $0x7c] sm:$0xf] %vm441, %v915
  %v948 = vld [vmem:[%s7] sm:$0xf]
  %v949 = vld [vmem:[%s7 + $0x4] sm:$0xf]
  %v950 = vld [vmem:[%s7 + $0x8] sm:$0xf]
  %v951 = vld [vmem:[%s7 + $0xc] sm:$0xf]
  %v952 = vld [vmem:[%s7 + $0x10] sm:$0xf]
  %v953 = vld [vmem:[%s7 + $0x14] sm:$0xf]
  %v954 = vld [vmem:[%s7 + $0x18] sm:$0xf]
  %v955 = vld [vmem:[%s7 + $0x1c] sm:$0xf]
  %v964 = vunpack.c.l.b16 %v948
  %v965 = vunpack.c.l.b16 %v949
  %v966 = vunpack.c.l.b16 %v950
  %v967 = vunpack.c.l.b16 %v951
  %v968 = vunpack.c.l.b16 %v952
  %v969 = vunpack.c.l.b16 %v953
  %v970 = vunpack.c.l.b16 %v954
  %v971 = vunpack.c.l.b16 %v955
  %v972 = vpack.c.b16 %v965, %v964
  %v973 = vpack.c.b16 %v967, %v966
  %v974 = vpack.c.b16 %v969, %v968
  %v975 = vpack.c.b16 %v971, %v970
  %v981 = vsel %vm271, %v219, 0
  %v984 = vsel %vm271, %v220, 0
  %v987 = vsel %vm271, %v221, 0
  %v990 = vsel %vm271, %v222, 0
  %v993 = vsel %vm271, %v223, 0
  %v996 = vsel %vm271, %v224, 0
  %v999 = vsel %vm271, %v225, 0
  %v1002 = vsel %vm271, %v226, 0
  %v1005 = vsel %vm271, %v227, 0
  %v1008 = vsel %vm271, %v228, 0
  %v1011 = vsel %vm271, %v229, 0
  %v1014 = vsel %vm271, %v230, 0
  %v1017 = vsel %vm271, %v231, 0
  %v1020 = vsel %vm271, %v232, 0
  %v1023 = vsel %vm271, %v233, 0
  %v1026 = vsel %vm271, %v234, 0
  %1028 = vmatpush.bf16.msra.mxu0 0
  %1029 = vmatpush.bf16.msra.mxu0 0
  %1030 = vmatpush.bf16.msra.mxu0 0
  %1031 = vmatpush.bf16.msra.mxu0 0
  %1032 = vmatpush.bf16.msra.mxu0 %v975
  %1033 = vmatpush.bf16.msra.mxu0 %v974
  %1034 = vmatpush.bf16.msra.mxu0 %v973
  %1035 = vmatpush.bf16.msra.mxu0 %v972
  %1036 = vmatmul.bf16.gmra.mxu0 %v981
  %v1037 = vpop.f32.mrf.mxu0
  %v1038 = vadd.f32 0.0, %v1037
  %v1039 = vpop.f32.mrf.mxu0
  %v1040 = vadd.f32 0.0, %v1039
  %1041 = vmatmul.bf16.gmra.mxu0 %v984
  %v1042 = vpop.f32.mrf.mxu0
  %v1043 = vadd.f32 0.0, %v1042
  %v1044 = vpop.f32.mrf.mxu0
  %v1045 = vadd.f32 0.0, %v1044
  %1046 = vmatmul.bf16.gmra.mxu0 %v987
  %v1047 = vpop.f32.mrf.mxu0
  %v1048 = vadd.f32 0.0, %v1047
  %v1049 = vpop.f32.mrf.mxu0
  %v1050 = vadd.f32 0.0, %v1049
  %1051 = vmatmul.bf16.gmra.mxu0 %v990
  %v1052 = vpop.f32.mrf.mxu0
  %v1053 = vadd.f32 0.0, %v1052
  %v1054 = vpop.f32.mrf.mxu0
  %v1055 = vadd.f32 0.0, %v1054
  %1056 = vmatmul.bf16.gmra.mxu0 %v993
  %v1057 = vpop.f32.mrf.mxu0
  %v1058 = vadd.f32 0.0, %v1057
  %v1059 = vpop.f32.mrf.mxu0
  %v1060 = vadd.f32 0.0, %v1059
  %1061 = vmatmul.bf16.gmra.mxu0 %v996
  %v1062 = vpop.f32.mrf.mxu0
  %v1063 = vadd.f32 0.0, %v1062
  %v1064 = vpop.f32.mrf.mxu0
  %v1065 = vadd.f32 0.0, %v1064
  %1066 = vmatmul.bf16.gmra.mxu0 %v999
  %v1067 = vpop.f32.mrf.mxu0
  %v1068 = vadd.f32 0.0, %v1067
  %v1069 = vpop.f32.mrf.mxu0
  %v1070 = vadd.f32 0.0, %v1069
  %1071 = vmatmul.bf16.gmra.mxu0 %v1002
  %v1072 = vpop.f32.mrf.mxu0
  %v1073 = vadd.f32 0.0, %v1072
  %v1074 = vpop.f32.mrf.mxu0
  %v1075 = vadd.f32 0.0, %v1074
  %1076 = vmatmul.bf16.gmra.mxu0 %v1005
  %v1077 = vpop.f32.mrf.mxu0
  %v1078 = vadd.f32 0.0, %v1077
  %v1079 = vpop.f32.mrf.mxu0
  %v1080 = vadd.f32 0.0, %v1079
  %1081 = vmatmul.bf16.gmra.mxu0 %v1008
  %v1082 = vpop.f32.mrf.mxu0
  %v1083 = vadd.f32 0.0, %v1082
  %v1084 = vpop.f32.mrf.mxu0
  %v1085 = vadd.f32 0.0, %v1084
  %1086 = vmatmul.bf16.gmra.mxu0 %v1011
  %v1087 = vpop.f32.mrf.mxu0
  %v1088 = vadd.f32 0.0, %v1087
  %v1089 = vpop.f32.mrf.mxu0
  %v1090 = vadd.f32 0.0, %v1089
  %1091 = vmatmul.bf16.gmra.mxu0 %v1014
  %v1092 = vpop.f32.mrf.mxu0
  %v1093 = vadd.f32 0.0, %v1092
  %v1094 = vpop.f32.mrf.mxu0
  %v1095 = vadd.f32 0.0, %v1094
  %1096 = vmatmul.bf16.gmra.mxu0 %v1017
  %v1097 = vpop.f32.mrf.mxu0
  %v1098 = vadd.f32 0.0, %v1097
  %v1099 = vpop.f32.mrf.mxu0
  %v1100 = vadd.f32 0.0, %v1099
  %1101 = vmatmul.bf16.gmra.mxu0 %v1020
  %v1102 = vpop.f32.mrf.mxu0
  %v1103 = vadd.f32 0.0, %v1102
  %v1104 = vpop.f32.mrf.mxu0
  %v1105 = vadd.f32 0.0, %v1104
  %1106 = vmatmul.bf16.gmra.mxu0 %v1023
  %v1107 = vpop.f32.mrf.mxu0
  %v1108 = vadd.f32 0.0, %v1107
  %v1109 = vpop.f32.mrf.mxu0
  %v1110 = vadd.f32 0.0, %v1109
  %1111 = vmatmul.bf16.gmra.mxu0 %v1026
  %v1112 = vpop.f32.mrf.mxu0
  %v1113 = vadd.f32 0.0, %v1112
  %v1114 = vpop.f32.mrf.mxu0
  %v1115 = vadd.f32 0.0, %v1114
  %1116 = vdwg.mxu0
  %v1117 = vpack.c.bf16 %v1038, %v1038
  %v1118 = vpack.c.bf16 %v1040, %v1040
  %v1119 = vpack.c.bf16 %v1043, %v1043
  %v1120 = vpack.c.bf16 %v1045, %v1045
  %v1121 = vpack.c.bf16 %v1048, %v1048
  %v1122 = vpack.c.bf16 %v1050, %v1050
  %v1123 = vpack.c.bf16 %v1053, %v1053
  %v1124 = vpack.c.bf16 %v1055, %v1055
  %v1125 = vpack.c.bf16 %v1058, %v1058
  %v1126 = vpack.c.bf16 %v1060, %v1060
  %v1127 = vpack.c.bf16 %v1063, %v1063
  %v1128 = vpack.c.bf16 %v1065, %v1065
  %v1129 = vpack.c.bf16 %v1068, %v1068
  %v1130 = vpack.c.bf16 %v1070, %v1070
  %v1131 = vpack.c.bf16 %v1073, %v1073
  %v1132 = vpack.c.bf16 %v1075, %v1075
  %v1133 = vpack.c.bf16 %v1078, %v1078
  %v1134 = vpack.c.bf16 %v1080, %v1080
  %v1135 = vpack.c.bf16 %v1083, %v1083
  %v1136 = vpack.c.bf16 %v1085, %v1085
  %v1137 = vpack.c.bf16 %v1088, %v1088
  %v1138 = vpack.c.bf16 %v1090, %v1090
  %v1139 = vpack.c.bf16 %v1093, %v1093
  %v1140 = vpack.c.bf16 %v1095, %v1095
  %v1141 = vpack.c.bf16 %v1098, %v1098
  %v1142 = vpack.c.bf16 %v1100, %v1100
  %v1143 = vpack.c.bf16 %v1103, %v1103
  %v1144 = vpack.c.bf16 %v1105, %v1105
  %v1145 = vpack.c.bf16 %v1108, %v1108
  %v1146 = vpack.c.bf16 %v1110, %v1110
  %v1147 = vpack.c.bf16 %v1113, %v1113
  %v1148 = vpack.c.bf16 %v1115, %v1115
  %1149 = vst.msk [vmem:[%s14] sm:$0xf] %vm441, %v1117
  %1150 = vst.msk [vmem:[%s14 + $0x4] sm:$0xf] %vm441, %v1118
  %1151 = vst.msk [vmem:[%s14 + $0x8] sm:$0xf] %vm441, %v1119
  %1152 = vst.msk [vmem:[%s14 + $0xc] sm:$0xf] %vm441, %v1120
  %1153 = vst.msk [vmem:[%s14 + $0x10] sm:$0xf] %vm441, %v1121
  %1154 = vst.msk [vmem:[%s14 + $0x14] sm:$0xf] %vm441, %v1122
  %1155 = vst.msk [vmem:[%s14 + $0x18] sm:$0xf] %vm441, %v1123
  %1156 = vst.msk [vmem:[%s14 + $0x1c] sm:$0xf] %vm441, %v1124
  %1157 = vst.msk [vmem:[%s14 + $0x20] sm:$0xf] %vm441, %v1125
  %1158 = vst.msk [vmem:[%s14 + $0x24] sm:$0xf] %vm441, %v1126
  %1159 = vst.msk [vmem:[%s14 + $0x28] sm:$0xf] %vm441, %v1127
  %1160 = vst.msk [vmem:[%s14 + $0x2c] sm:$0xf] %vm441, %v1128
  %1161 = vst.msk [vmem:[%s14 + $0x30] sm:$0xf] %vm441, %v1129
  %1162 = vst.msk [vmem:[%s14 + $0x34] sm:$0xf] %vm441, %v1130
  %1163 = vst.msk [vmem:[%s14 + $0x38] sm:$0xf] %vm441, %v1131
  %1164 = vst.msk [vmem:[%s14 + $0x3c] sm:$0xf] %vm441, %v1132
  %1165 = vst.msk [vmem:[%s14 + $0x40] sm:$0xf] %vm441, %v1133
  %1166 = vst.msk [vmem:[%s14 + $0x44] sm:$0xf] %vm441, %v1134
  %1167 = vst.msk [vmem:[%s14 + $0x48] sm:$0xf] %vm441, %v1135
  %1168 = vst.msk [vmem:[%s14 + $0x4c] sm:$0xf] %vm441, %v1136
  %1169 = vst.msk [vmem:[%s14 + $0x50] sm:$0xf] %vm441, %v1137
  %1170 = vst.msk [vmem:[%s14 + $0x54] sm:$0xf] %vm441, %v1138
  %1171 = vst.msk [vmem:[%s14 + $0x58] sm:$0xf] %vm441, %v1139
  %1172 = vst.msk [vmem:[%s14 + $0x5c] sm:$0xf] %vm441, %v1140
  %1173 = vst.msk [vmem:[%s14 + $0x60] sm:$0xf] %vm441, %v1141
  %1174 = vst.msk [vmem:[%s14 + $0x64] sm:$0xf] %vm441, %v1142
  %1175 = vst.msk [vmem:[%s14 + $0x68] sm:$0xf] %vm441, %v1143
  %1176 = vst.msk [vmem:[%s14 + $0x6c] sm:$0xf] %vm441, %v1144
  %1177 = vst.msk [vmem:[%s14 + $0x70] sm:$0xf] %vm441, %v1145
  %1178 = vst.msk [vmem:[%s14 + $0x74] sm:$0xf] %vm441, %v1146
  %1179 = vst.msk [vmem:[%s14 + $0x78] sm:$0xf] %vm441, %v1147
  %1180 = vst.msk [vmem:[%s14 + $0x7c] sm:$0xf] %vm441, %v1148
  // Predicated region
  $region46: #{tpu_custom_call.1} parent=0 // pred_check
    _
  $region47: #{tpu_custom_call.1} parent=0 // pred_check_branch
    %1182 = sbr.rel (0) target = $region49
  $region48: #{tpu_custom_call.1} parent=0 // pred_region
    _
  $region49: #{tpu_custom_call.1} parent=0 // pred_fallthru
    _
  // Predicated region
  $region50: #{tpu_custom_call.1} parent=0 // pred_check
    _
  $region51: #{tpu_custom_call.1} parent=0 // pred_check_branch
    %1184 = sbr.rel (0) target = $region53
  $region52: #{tpu_custom_call.1} parent=0 // pred_region
    _
  $region53: #{tpu_custom_call.1} parent=0 // pred_fallthru
    _
  // Predicated region
  $region54: #{tpu_custom_call.1} parent=0 // pred_check
    _
  $region55: #{tpu_custom_call.1} parent=0 // pred_check_branch
    %1186 = sbr.rel (0) target = $region57
  $region56: #{tpu_custom_call.1} parent=0 // pred_region
    _
  $region57: #{tpu_custom_call.1} parent=0 // pred_fallthru
    _
  // Predicated region
  $region58: #{tpu_custom_call.1} parent=0 // pred_check
    _
  $region59: #{tpu_custom_call.1} parent=0 // pred_check_branch
    %1188 = sbr.rel (0) target = $region61
  $region60: #{tpu_custom_call.1} parent=0 // pred_region
    _
  $region61: #{tpu_custom_call.1} parent=0 // pred_fallthru
    _
  // Predicated region
  $region62: #{tpu_custom_call.1} parent=0 // pred_check
    _
  $region63: #{tpu_custom_call.1} parent=0 // pred_check_branch
    %1190 = sbr.rel (0) target = $region65
  $region64: #{tpu_custom_call.1} parent=0 // pred_region
    _
  $region65: #{tpu_custom_call.1} parent=0 // pred_fallthru
    _
  // Predicated region
  $region66: #{tpu_custom_call.1} parent=0 // pred_check
    _
  $region67: #{tpu_custom_call.1} parent=0 // pred_check_branch
    %1192 = sbr.rel (0) target = $region69
  $region68: #{tpu_custom_call.1} parent=0 // pred_region
    _
  $region69: #{tpu_custom_call.1} parent=0 // pred_fallthru
    _
  // Predicated region
  $region70: #{tpu_custom_call.1} parent=0 // pred_check
    _
  $region71: #{tpu_custom_call.1} parent=0 // pred_check_branch
    %1194 = sbr.rel (0) target = $region73
  $region72: #{tpu_custom_call.1} parent=0 // pred_region
    _
  $region73: #{tpu_custom_call.1} parent=0 // pred_fallthru
    _
  // Predicated region
  $region74: #{tpu_custom_call.1} parent=0 // pred_check
    _
  $region75: #{tpu_custom_call.1} parent=0 // pred_check_branch
    %1196 = sbr.rel (0) target = $region77
  $region76: #{tpu_custom_call.1} parent=0 // pred_region
    _
  $region77: #{tpu_custom_call.1} parent=0 // pred_fallthru
    _

</llo_original>
